<compile_context>
chip_gen: v7x
topology: tpu7x:2x2x1
jax: 0.10.0
libtpu: 0.0.40
codegen_flags: <defaults>
</compile_context>

<pallas_src>
import functools

import jax
import jax.numpy as jnp
from jax.experimental import pallas as pl
from jax.experimental.pallas import tpu as pltpu


def movie_vae_kernel(
    x_ref, eps_ref,
    w_e1, b_e1, w_e2, b_e2,
    w_head, b_head,                       # fused [w_mu | w_lv], [b_mu | b_lv]
    w_d1, b_d1, w_d2, b_d2, w_d3, b_d3,
    recon_ref, stats_ref,                 # stats = [mu | logvar | z]
    *, latent_dim,
):
    x = x_ref[...]

    # ---- encoder: Linear -> ReLU -> Linear -> ReLU (MXU + VPU) ----
    h = jnp.dot(x, w_e1[...], preferred_element_type=jnp.float32) + b_e1[...]
    h = jnp.maximum(h, 0.0)
    h = jnp.dot(h, w_e2[...], preferred_element_type=jnp.float32) + b_e2[...]
    h = jnp.maximum(h, 0.0)

    # ---- fused latent heads: one matmul producing [mu | logvar] ----
    heads = jnp.dot(h, w_head[...], preferred_element_type=jnp.float32) + b_head[...]
    mu = heads[:, :latent_dim]
    logvar = heads[:, latent_dim:]

    # ---- reparameterize: z = mu + eps * exp(0.5 * logvar) (VPU/EUP) ----
    std = jnp.exp(0.5 * logvar)
    z = mu + eps_ref[...] * std

    # ---- decoder: Linear -> ReLU -> Linear -> ReLU -> Linear ----
    d = jnp.dot(z, w_d1[...], preferred_element_type=jnp.float32) + b_d1[...]
    d = jnp.maximum(d, 0.0)
    d = jnp.dot(d, w_d2[...], preferred_element_type=jnp.float32) + b_d2[...]
    d = jnp.maximum(d, 0.0)
    recon = jnp.dot(d, w_d3[...], preferred_element_type=jnp.float32) + b_d3[...]

    # Single lane-contiguous store of the packed latent stats.
    recon_ref[...] = recon
    stats_ref[...] = jnp.concatenate([heads, z], axis=-1)   # [mu | logvar | z]


def movie_vae_forward(x, eps, params, *, tile_b=128):
    """x: (B, input_dim) f32, eps: (B, latent_dim) f32, params: dict of weights."""
    B, input_dim = x.shape
    latent_dim = eps.shape[1]

    # Pack the mu/logvar head weights ONCE in the wrapper (no in-kernel layout).
    w_head = jnp.concatenate([params["w_mu"], params["w_lv"]], axis=1)
    b_head = jnp.concatenate([params["b_mu"], params["b_lv"]], axis=1)

    weights = [
        params["w_e1"], params["b_e1"], params["w_e2"], params["b_e2"],
        w_head, b_head,
        params["w_d1"], params["b_d1"], params["w_d2"], params["b_d2"],
        params["w_d3"], params["b_d3"],
    ]

    tile_b = min(tile_b, B)
    grid = (pl.cdiv(B, tile_b),)

    def batch_spec(feat):
        # Activation / output tiles march over the batch axis.
        return pl.BlockSpec((tile_b, feat), lambda i: (i, 0))

    def resident_spec(arr):
        # Full-extent block, same index every grid step -> stays resident in VMEM.
        return pl.BlockSpec(arr.shape, lambda i: (0, 0))

    in_specs = [batch_spec(input_dim), batch_spec(latent_dim)] + [
        resident_spec(w) for w in weights
    ]
    out_specs = (batch_spec(input_dim), batch_spec(3 * latent_dim))
    out_shapes = (
        jax.ShapeDtypeStruct((B, input_dim), jnp.float32),       # reconstruction
        jax.ShapeDtypeStruct((B, 3 * latent_dim), jnp.float32),  # [mu|logvar|z]
    )

    kernel = functools.partial(movie_vae_kernel, latent_dim=latent_dim)

    recon, stats = pl.pallas_call(
        kernel,
        out_shape=out_shapes,
        grid_spec=pltpu.PrefetchScalarGridSpec(
            num_scalar_prefetch=0,
            grid=grid,
            in_specs=in_specs,
            out_specs=out_specs,
        ),
        compiler_params=pltpu.CompilerParams(
            dimension_semantics=("parallel",),         # batch tiles are independent
            vmem_limit_bytes=32 * 1024 * 1024,         # explicit; safe on v7x (64 MiB)
        ),
    )(x, eps, *weights)

    # Splitting the packed slab outside the kernel is a free layout op.
    mu = stats[:, :latent_dim]
    logvar = stats[:, latent_dim:2 * latent_dim]
    z = stats[:, 2 * latent_dim:]
    return recon, mu, logvar, z


def init_params(key, input_dim, latent_dim, hidden_dim):
    """Deterministic PyTorch-style (uniform +/- 1/sqrt(fan_in)) init.

    Weights are stored as (in_features, out_features)."""
    def linear(key, fan_in, fan_out):
        kw, kb = jax.random.split(key)
        bound = 1.0 / jnp.sqrt(jnp.asarray(fan_in, jnp.float32))
        w = jax.random.uniform(kw, (fan_in, fan_out), jnp.float32, -bound, bound)
        b = jax.random.uniform(kb, (1, fan_out), jnp.float32, -bound, bound)
        return w, b

    keys = jax.random.split(key, 7)
    p = {}
    p["w_e1"], p["b_e1"] = linear(keys[0], input_dim, hidden_dim)
    p["w_e2"], p["b_e2"] = linear(keys[1], hidden_dim, hidden_dim)
    p["w_mu"], p["b_mu"] = linear(keys[2], hidden_dim, latent_dim)
    p["w_lv"], p["b_lv"] = linear(keys[3], hidden_dim, latent_dim)
    p["w_d1"], p["b_d1"] = linear(keys[4], latent_dim, hidden_dim)
    p["w_d2"], p["b_d2"] = linear(keys[5], hidden_dim, hidden_dim)
    p["w_d3"], p["b_d3"] = linear(keys[6], hidden_dim, input_dim)
    return p


def movie_vae_reference(x, eps, p):
    """Pure-JAX reference for correctness checking."""
    h = jax.nn.relu(x @ p["w_e1"] + p["b_e1"])
    h = jax.nn.relu(h @ p["w_e2"] + p["b_e2"])
    mu = h @ p["w_mu"] + p["b_mu"]
    logvar = h @ p["w_lv"] + p["b_lv"]
    z = mu + eps * jnp.exp(0.5 * logvar)
    d = jax.nn.relu(z @ p["w_d1"] + p["b_d1"])
    d = jax.nn.relu(d @ p["w_d2"] + p["b_d2"])
    recon = d @ p["w_d3"] + p["b_d3"]
    return recon, mu, logvar, z


if __name__ == "__main__":
    INPUT_DIM = 32
    LATENT_DIM = 2
    HIDDEN_DIM = 64
    BATCH = 256          # multiple of TILE_B=128 -> every grid step is a full tile

    root = jax.random.PRNGKey(0)
    k_params, k_x, k_eps = jax.random.split(root, 3)

    params = init_params(k_params, INPUT_DIM, LATENT_DIM, HIDDEN_DIM)
    x = jax.random.normal(k_x, (BATCH, INPUT_DIM), jnp.float32)
    # TODO(synk): torch.randn_like noise is replaced by a deterministic JAX draw
    # passed into the kernel (no bit-exact equivalent).
    eps = jax.random.normal(k_eps, (BATCH, LATENT_DIM), jnp.float32)

    recon, mu, logvar, z = movie_vae_forward(x, eps, params)
    jax.block_until_ready((recon, mu, logvar, z))

    # Sanity check against the pure-JAX reference.
    r_ref, mu_ref, lv_ref, z_ref = movie_vae_reference(x, eps, params)
    assert jnp.allclose(recon, r_ref, atol=1e-4, rtol=1e-4)
    assert jnp.allclose(mu, mu_ref, atol=1e-4, rtol=1e-4)
    assert jnp.allclose(logvar, lv_ref, atol=1e-4, rtol=1e-4)
    assert jnp.allclose(z, z_ref, atol=1e-4, rtol=1e-4)

    print("KERNEL_OK")
</pallas_src>

<mosaic_0001>
module attributes {stable_mosaic.version = 11 : i64} {
  func.func @movie_vae_kernel(%arg0: i32, %arg1: memref<128x32xf32, #tpu.memory_space<vmem>>, %arg2: memref<128x2xf32, #tpu.memory_space<vmem>>, %arg3: memref<32x64xf32, #tpu.memory_space<vmem>>, %arg4: memref<1x64xf32, #tpu.memory_space<vmem>>, %arg5: memref<64x64xf32, #tpu.memory_space<vmem>>, %arg6: memref<1x64xf32, #tpu.memory_space<vmem>>, %arg7: memref<64x4xf32, #tpu.memory_space<vmem>>, %arg8: memref<1x4xf32, #tpu.memory_space<vmem>>, %arg9: memref<2x64xf32, #tpu.memory_space<vmem>>, %arg10: memref<1x64xf32, #tpu.memory_space<vmem>>, %arg11: memref<64x64xf32, #tpu.memory_space<vmem>>, %arg12: memref<1x64xf32, #tpu.memory_space<vmem>>, %arg13: memref<64x32xf32, #tpu.memory_space<vmem>>, %arg14: memref<1x32xf32, #tpu.memory_space<vmem>>, %arg15: memref<128x32xf32, #tpu.memory_space<vmem>>, %arg16: memref<128x6xf32, #tpu.memory_space<vmem>>) attributes {dimension_semantics = [#tpu.dimension_semantics<parallel>], iteration_bounds = array<i64: 2>, scalar_prefetch = 0 : i64, scratch_operands = 0 : i64, tpu.core_type = #tpu.core_type<tc>, window_params = [{transform_indices = @transform_0, window_bounds = array<i64: 128, 32>}, {transform_indices = @transform_1, window_bounds = array<i64: 128, 2>}, {pipeline_mode = #tpu.pipeline_mode<synchronous>, transform_indices = @transform_2, window_bounds = array<i64: 32, 64>}, {pipeline_mode = #tpu.pipeline_mode<synchronous>, transform_indices = @transform_3, window_bounds = array<i64: 1, 64>}, {pipeline_mode = #tpu.pipeline_mode<synchronous>, transform_indices = @transform_4, window_bounds = array<i64: 64, 64>}, {pipeline_mode = #tpu.pipeline_mode<synchronous>, transform_indices = @transform_5, window_bounds = array<i64: 1, 64>}, {pipeline_mode = #tpu.pipeline_mode<synchronous>, transform_indices = @transform_6, window_bounds = array<i64: 64, 4>}, {pipeline_mode = #tpu.pipeline_mode<synchronous>, transform_indices = @transform_7, window_bounds = array<i64: 1, 4>}, {pipeline_mode = #tpu.pipeline_mode<synchronous>, transform_indices = @transform_8, window_bounds = array<i64: 2, 64>}, {pipeline_mode = #tpu.pipeline_mode<synchronous>, transform_indices = @transform_9, window_bounds = array<i64: 1, 64>}, {pipeline_mode = #tpu.pipeline_mode<synchronous>, transform_indices = @transform_10, window_bounds = array<i64: 64, 64>}, {pipeline_mode = #tpu.pipeline_mode<synchronous>, transform_indices = @transform_11, window_bounds = array<i64: 1, 64>}, {pipeline_mode = #tpu.pipeline_mode<synchronous>, transform_indices = @transform_12, window_bounds = array<i64: 64, 32>}, {pipeline_mode = #tpu.pipeline_mode<synchronous>, transform_indices = @transform_13, window_bounds = array<i64: 1, 32>}, {transform_indices = @transform_14, window_bounds = array<i64: 128, 32>}, {transform_indices = @transform_15, window_bounds = array<i64: 128, 6>}]} {
    %c0 = arith.constant 0 : index
    %c0_0 = arith.constant 0 : index
    %0 = vector.load %arg1[%c0, %c0_0] : memref<128x32xf32, #tpu.memory_space<vmem>>, vector<128x32xf32>
    %c0_1 = arith.constant 0 : index
    %c0_2 = arith.constant 0 : index
    %1 = vector.load %arg3[%c0_1, %c0_2] : memref<32x64xf32, #tpu.memory_space<vmem>>, vector<32x64xf32>
    %cst = arith.constant dense<0.000000e+00> : vector<128x64xf32>
    %2 = tpu.matmul %0, %1, %cst {dimension_numbers = #tpu.dot_dimension_numbers<[1], [0], [0], [1], [0, 0, 1, 1], [], []>} : vector<128x32xf32>, vector<32x64xf32>, vector<128x64xf32> -> vector<128x64xf32>
    %c0_3 = arith.constant 0 : index
    %c0_4 = arith.constant 0 : index
    %3 = vector.load %arg4[%c0_3, %c0_4] : memref<1x64xf32, #tpu.memory_space<vmem>>, vector<1x64xf32>
    %4 = vector.broadcast %3 : vector<1x64xf32> to vector<128x64xf32>
    %5 = arith.addf %2, %4 : vector<128x64xf32>
    %cst_5 = arith.constant 0.000000e+00 : f32
    %6 = vector.broadcast %cst_5 : f32 to vector<128x64xf32>
    %7 = arith.maximumf %5, %6 : vector<128x64xf32>
    %c0_6 = arith.constant 0 : index
    %c0_7 = arith.constant 0 : index
    %8 = vector.load %arg5[%c0_6, %c0_7] : memref<64x64xf32, #tpu.memory_space<vmem>>, vector<64x64xf32>
    %cst_8 = arith.constant dense<0.000000e+00> : vector<128x64xf32>
    %9 = tpu.matmul %7, %8, %cst_8 {dimension_numbers = #tpu.dot_dimension_numbers<[1], [0], [0], [1], [0, 0, 1, 1], [], []>} : vector<128x64xf32>, vector<64x64xf32>, vector<128x64xf32> -> vector<128x64xf32>
    %c0_9 = arith.constant 0 : index
    %c0_10 = arith.constant 0 : index
    %10 = vector.load %arg6[%c0_9, %c0_10] : memref<1x64xf32, #tpu.memory_space<vmem>>, vector<1x64xf32>
    %11 = vector.broadcast %10 : vector<1x64xf32> to vector<128x64xf32>
    %12 = arith.addf %9, %11 : vector<128x64xf32>
    %cst_11 = arith.constant 0.000000e+00 : f32
    %13 = vector.broadcast %cst_11 : f32 to vector<128x64xf32>
    %14 = arith.maximumf %12, %13 : vector<128x64xf32>
    %c0_12 = arith.constant 0 : index
    %c0_13 = arith.constant 0 : index
    %15 = vector.load %arg7[%c0_12, %c0_13] : memref<64x4xf32, #tpu.memory_space<vmem>>, vector<64x4xf32>
    %cst_14 = arith.constant dense<0.000000e+00> : vector<128x4xf32>
    %16 = tpu.matmul %14, %15, %cst_14 {dimension_numbers = #tpu.dot_dimension_numbers<[1], [0], [0], [1], [0, 0, 1, 1], [], []>} : vector<128x64xf32>, vector<64x4xf32>, vector<128x4xf32> -> vector<128x4xf32>
    %c0_15 = arith.constant 0 : index
    %c0_16 = arith.constant 0 : index
    %17 = vector.load %arg8[%c0_15, %c0_16] : memref<1x4xf32, #tpu.memory_space<vmem>>, vector<1x4xf32>
    %18 = vector.broadcast %17 : vector<1x4xf32> to vector<128x4xf32>
    %19 = arith.addf %16, %18 : vector<128x4xf32>
    %20 = vector.extract_strided_slice %19 {offsets = [0, 0], sizes = [128, 2], strides = [1, 1]} : vector<128x4xf32> to vector<128x2xf32>
    %21 = vector.extract_strided_slice %19 {offsets = [0, 2], sizes = [128, 2], strides = [1, 1]} : vector<128x4xf32> to vector<128x2xf32>
    %cst_17 = arith.constant 5.000000e-01 : f32
    %22 = vector.broadcast %cst_17 : f32 to vector<128x2xf32>
    %23 = arith.mulf %22, %21 : vector<128x2xf32>
    %24 = math.exp %23 : vector<128x2xf32>
    %c0_18 = arith.constant 0 : index
    %c0_19 = arith.constant 0 : index
    %25 = vector.load %arg2[%c0_18, %c0_19] : memref<128x2xf32, #tpu.memory_space<vmem>>, vector<128x2xf32>
    %26 = arith.mulf %25, %24 : vector<128x2xf32>
    %27 = arith.addf %20, %26 : vector<128x2xf32>
    %c0_20 = arith.constant 0 : index
    %c0_21 = arith.constant 0 : index
    %28 = vector.load %arg9[%c0_20, %c0_21] : memref<2x64xf32, #tpu.memory_space<vmem>>, vector<2x64xf32>
    %cst_22 = arith.constant dense<0.000000e+00> : vector<128x64xf32>
    %29 = tpu.matmul %27, %28, %cst_22 {dimension_numbers = #tpu.dot_dimension_numbers<[1], [0], [0], [1], [0, 0, 1, 1], [], []>} : vector<128x2xf32>, vector<2x64xf32>, vector<128x64xf32> -> vector<128x64xf32>
    %c0_23 = arith.constant 0 : index
    %c0_24 = arith.constant 0 : index
    %30 = vector.load %arg10[%c0_23, %c0_24] : memref<1x64xf32, #tpu.memory_space<vmem>>, vector<1x64xf32>
    %31 = vector.broadcast %30 : vector<1x64xf32> to vector<128x64xf32>
    %32 = arith.addf %29, %31 : vector<128x64xf32>
    %cst_25 = arith.constant 0.000000e+00 : f32
    %33 = vector.broadcast %cst_25 : f32 to vector<128x64xf32>
    %34 = arith.maximumf %32, %33 : vector<128x64xf32>
    %c0_26 = arith.constant 0 : index
    %c0_27 = arith.constant 0 : index
    %35 = vector.load %arg11[%c0_26, %c0_27] : memref<64x64xf32, #tpu.memory_space<vmem>>, vector<64x64xf32>
    %cst_28 = arith.constant dense<0.000000e+00> : vector<128x64xf32>
    %36 = tpu.matmul %34, %35, %cst_28 {dimension_numbers = #tpu.dot_dimension_numbers<[1], [0], [0], [1], [0, 0, 1, 1], [], []>} : vector<128x64xf32>, vector<64x64xf32>, vector<128x64xf32> -> vector<128x64xf32>
    %c0_29 = arith.constant 0 : index
    %c0_30 = arith.constant 0 : index
    %37 = vector.load %arg12[%c0_29, %c0_30] : memref<1x64xf32, #tpu.memory_space<vmem>>, vector<1x64xf32>
    %38 = vector.broadcast %37 : vector<1x64xf32> to vector<128x64xf32>
    %39 = arith.addf %36, %38 : vector<128x64xf32>
    %cst_31 = arith.constant 0.000000e+00 : f32
    %40 = vector.broadcast %cst_31 : f32 to vector<128x64xf32>
    %41 = arith.maximumf %39, %40 : vector<128x64xf32>
    %c0_32 = arith.constant 0 : index
    %c0_33 = arith.constant 0 : index
    %42 = vector.load %arg13[%c0_32, %c0_33] : memref<64x32xf32, #tpu.memory_space<vmem>>, vector<64x32xf32>
    %cst_34 = arith.constant dense<0.000000e+00> : vector<128x32xf32>
    %43 = tpu.matmul %41, %42, %cst_34 {dimension_numbers = #tpu.dot_dimension_numbers<[1], [0], [0], [1], [0, 0, 1, 1], [], []>} : vector<128x64xf32>, vector<64x32xf32>, vector<128x32xf32> -> vector<128x32xf32>
    %c0_35 = arith.constant 0 : index
    %c0_36 = arith.constant 0 : index
    %44 = vector.load %arg14[%c0_35, %c0_36] : memref<1x32xf32, #tpu.memory_space<vmem>>, vector<1x32xf32>
    %45 = vector.broadcast %44 : vector<1x32xf32> to vector<128x32xf32>
    %46 = arith.addf %43, %45 : vector<128x32xf32>
    %c0_37 = arith.constant 0 : index
    %c0_38 = arith.constant 0 : index
    %47 = vector.load %arg15[%c0_37, %c0_38] : memref<128x32xf32, #tpu.memory_space<vmem>>, vector<128x32xf32>
    tpu.vector_store %arg15[%c0_37, %c0_38], %46 {strides = array<i32>} : memref<128x32xf32, #tpu.memory_space<vmem>>, vector<128x32xf32>,
    %48 = tpu.concatenate %19, %27 in 1 : vector<128x4xf32>, vector<128x2xf32> -> vector<128x6xf32>
    %c0_39 = arith.constant 0 : index
    %c0_40 = arith.constant 0 : index
    %49 = vector.load %arg16[%c0_39, %c0_40] : memref<128x6xf32, #tpu.memory_space<vmem>>, vector<128x6xf32>
    tpu.vector_store %arg16[%c0_39, %c0_40], %48 {strides = array<i32>} : memref<128x6xf32, #tpu.memory_space<vmem>>, vector<128x6xf32>,
    return
  }
  func.func @transform_0(%arg0: i32) -> (i32, i32) {
    %c0_i32 = arith.constant 0 : i32
    %c0_i32_0 = arith.constant 0 : i32
    return %arg0, %c0_i32 : i32, i32
  }
  func.func @transform_1(%arg0: i32) -> (i32, i32) {
    %c0_i32 = arith.constant 0 : i32
    %c0_i32_0 = arith.constant 0 : i32
    return %arg0, %c0_i32 : i32, i32
  }
  func.func @transform_2(%arg0: i32) -> (i32, i32) {
    %c0_i32 = arith.constant 0 : i32
    %c0_i32_0 = arith.constant 0 : i32
    %c0_i32_1 = arith.constant 0 : i32
    return %c0_i32, %c0_i32_0 : i32, i32
  }
  func.func @transform_3(%arg0: i32) -> (i32, i32) {
    %c0_i32 = arith.constant 0 : i32
    %c0_i32_0 = arith.constant 0 : i32
    %c0_i32_1 = arith.constant 0 : i32
    return %c0_i32, %c0_i32_0 : i32, i32
  }
  func.func @transform_4(%arg0: i32) -> (i32, i32) {
    %c0_i32 = arith.constant 0 : i32
    %c0_i32_0 = arith.constant 0 : i32
    %c0_i32_1 = arith.constant 0 : i32
    return %c0_i32, %c0_i32_0 : i32, i32
  }
  func.func @transform_5(%arg0: i32) -> (i32, i32) {
    %c0_i32 = arith.constant 0 : i32
    %c0_i32_0 = arith.constant 0 : i32
    %c0_i32_1 = arith.constant 0 : i32
    return %c0_i32, %c0_i32_0 : i32, i32
  }
  func.func @transform_6(%arg0: i32) -> (i32, i32) {
    %c0_i32 = arith.constant 0 : i32
    %c0_i32_0 = arith.constant 0 : i32
    %c0_i32_1 = arith.constant 0 : i32
    return %c0_i32, %c0_i32_0 : i32, i32
  }
  func.func @transform_7(%arg0: i32) -> (i32, i32) {
    %c0_i32 = arith.constant 0 : i32
    %c0_i32_0 = arith.constant 0 : i32
    %c0_i32_1 = arith.constant 0 : i32
    return %c0_i32, %c0_i32_0 : i32, i32
  }
  func.func @transform_8(%arg0: i32) -> (i32, i32) {
    %c0_i32 = arith.constant 0 : i32
    %c0_i32_0 = arith.constant 0 : i32
    %c0_i32_1 = arith.constant 0 : i32
    return %c0_i32, %c0_i32_0 : i32, i32
  }
  func.func @transform_9(%arg0: i32) -> (i32, i32) {
    %c0_i32 = arith.constant 0 : i32
    %c0_i32_0 = arith.constant 0 : i32
    %c0_i32_1 = arith.constant 0 : i32
    return %c0_i32, %c0_i32_0 : i32, i32
  }
  func.func @transform_10(%arg0: i32) -> (i32, i32) {
    %c0_i32 = arith.constant 0 : i32
    %c0_i32_0 = arith.constant 0 : i32
    %c0_i32_1 = arith.constant 0 : i32
    return %c0_i32, %c0_i32_0 : i32, i32
  }
  func.func @transform_11(%arg0: i32) -> (i32, i32) {
    %c0_i32 = arith.constant 0 : i32
    %c0_i32_0 = arith.constant 0 : i32
    %c0_i32_1 = arith.constant 0 : i32
    return %c0_i32, %c0_i32_0 : i32, i32
  }
  func.func @transform_12(%arg0: i32) -> (i32, i32) {
    %c0_i32 = arith.constant 0 : i32
    %c0_i32_0 = arith.constant 0 : i32
    %c0_i32_1 = arith.constant 0 : i32
    return %c0_i32, %c0_i32_0 : i32, i32
  }
  func.func @transform_13(%arg0: i32) -> (i32, i32) {
    %c0_i32 = arith.constant 0 : i32
    %c0_i32_0 = arith.constant 0 : i32
    %c0_i32_1 = arith.constant 0 : i32
    return %c0_i32, %c0_i32_0 : i32, i32
  }
  func.func @transform_14(%arg0: i32) -> (i32, i32) {
    %c0_i32 = arith.constant 0 : i32
    %c0_i32_0 = arith.constant 0 : i32
    return %arg0, %c0_i32 : i32, i32
  }
  func.func @transform_15(%arg0: i32) -> (i32, i32) {
    %c0_i32 = arith.constant 0 : i32
    %c0_i32_0 = arith.constant 0 : i32
    return %arg0, %c0_i32 : i32, i32
  }
}

</mosaic_0001>

<llo_original>
// kernel: tpu_custom_call.1
$region0: #{tpu_custom_call.1}
  #allocation0 [shape = 'u32[]', space=smem, size = 0x4, offset = 0x4, fixed_abs, tag = 'smem constant byte address 0x4 - core index']
  #allocation1 [shape = 'u32[144,128]{1,0:T(1,128)}', space=vmem, size = 0x12000, scoped, tag = 'internal scratch']
  %s0 = inlined_call_operand.vmem [shape: f32[256,32], index: 0, kind: input, shape index: {}]
  %s1 = inlined_call_operand.vmem [shape: f32[256,2], index: 1, kind: input, shape index: {}]
  %s2 = inlined_call_operand.vmem [shape: f32[32,64], index: 2, kind: input, shape index: {}]
  %s3 = inlined_call_operand.vmem [shape: f32[1,64], index: 3, kind: input, shape index: {}]
  %s4 = inlined_call_operand.vmem [shape: f32[64,64], index: 4, kind: input, shape index: {}]
  %s5 = inlined_call_operand.vmem [shape: f32[1,64], index: 5, kind: input, shape index: {}]
  %s6 = inlined_call_operand.vmem [shape: f32[64,4], index: 6, kind: input, shape index: {}]
  %s7 = inlined_call_operand.vmem [shape: f32[1,4], index: 7, kind: input, shape index: {}]
  %s8 = inlined_call_operand.vmem [shape: f32[2,64], index: 8, kind: input, shape index: {}]
  %s9 = inlined_call_operand.vmem [shape: f32[1,64], index: 9, kind: input, shape index: {}]
  %s10 = inlined_call_operand.vmem [shape: f32[64,64], index: 10, kind: input, shape index: {}]
  %s11 = inlined_call_operand.vmem [shape: f32[1,64], index: 11, kind: input, shape index: {}]
  %s12 = inlined_call_operand.vmem [shape: f32[64,32], index: 12, kind: input, shape index: {}]
  %s13 = inlined_call_operand.vmem [shape: f32[1,32], index: 13, kind: input, shape index: {}]
  %s14 = inlined_call_operand.vmem [shape: f32[256,32], index: 14, kind: output, shape index: {0}]
  %s15 = inlined_call_operand.vmem [shape: f32[256,6], index: 15, kind: output, shape index: {1}]
  %16 = xla_tuple %s14, %s15
  %s17 = sld [smem:[#allocation0]]
  $region97: #{tpu_custom_call.1} parent=0
    _
  %s19 = ssub.s32 1, %s17
  %s20 = scalar_select 0, %s19, %s17
  loop: start=0, step=1, limit=4
  $region2: #{tpu_custom_call.1} parent=0 // loop_pre_header
    _
  $region3: #{tpu_custom_call.1} parent=0 // loop_header
    %s22 = sphi 0, %s26
    %p23 = scmp.ge.s32.totalorder %s22, 4
    %s32 = sphi 0, %s34
    %s35 = sphi 0, %s32
    %s36 = sphi 0, %s35
    %s52 = sphi 0, %s36
    %s58 = sphi 0, %s60
    %s61 = sphi 0, %s58
    %s62 = sphi 0, %s61
    %s78 = sphi 0, %s62
    %s82 = sphi 0, %s82
    %s84 = sphi 0, %s82
    %s85 = sphi 0, %s84
    %s99 = sphi 0, %s85
    %s103 = sphi 0, %s103
    %s105 = sphi 0, %s103
    %s106 = sphi 0, %s105
    %s120 = sphi 0, %s106
    %s124 = sphi 0, %s124
    %s126 = sphi 0, %s124
    %s127 = sphi 0, %s126
    %s141 = sphi 0, %s127
    %s145 = sphi 0, %s145
    %s147 = sphi 0, %s145
    %s148 = sphi 0, %s147
    %s162 = sphi 0, %s148
    %s166 = sphi 0, %s166
    %s168 = sphi 0, %s166
    %s169 = sphi 0, %s168
    %s183 = sphi 0, %s169
    %s187 = sphi 0, %s187
    %s189 = sphi 0, %s187
    %s190 = sphi 0, %s189
    %s204 = sphi 0, %s190
    %s208 = sphi 0, %s208
    %s210 = sphi 0, %s208
    %s211 = sphi 0, %s210
    %s225 = sphi 0, %s211
    %s229 = sphi 0, %s229
    %s231 = sphi 0, %s229
    %s232 = sphi 0, %s231
    %s246 = sphi 0, %s232
    %s250 = sphi 0, %s250
    %s252 = sphi 0, %s250
    %s253 = sphi 0, %s252
    %s267 = sphi 0, %s253
    %s271 = sphi 0, %s271
    %s273 = sphi 0, %s271
    %s274 = sphi 0, %s273
    %s288 = sphi 0, %s274
    %s292 = sphi 0, %s292
    %s294 = sphi 0, %s292
    %s295 = sphi 0, %s294
    %s309 = sphi 0, %s295
    %s313 = sphi 0, %s313
    %s315 = sphi 0, %s313
    %s316 = sphi 0, %s315
    %s330 = sphi 0, %s316
    %s336 = sphi 0, %s338
    %s339 = sphi 0, %s336
    %s340 = sphi 0, %s339
    %s356 = sphi 0, %s340
    %s362 = sphi 0, %s364
    %s365 = sphi 0, %s362
    %s366 = sphi 0, %s365
    %s382 = sphi 0, %s366
  $region4: #{tpu_custom_call.1} parent=0 // loop_header_branch
    %25 = sbr.rel (%p23) target = $region8
  $region5: #{tpu_custom_call.1} parent=0 // loop_body
    %s27 = ssub.s32 %s22, 1
    %s28 = ssub.s32 %s22, 2
    %s29 = sadd.s32 %s22, 1
    %s30 = ssub.s32 %s22, %s29
    %p31 = scmp.eq.s32.totalorder %s30, 0
    %s33 = sadd.s32 %s32, 1
    %s34 = scalar_select %p31, %s32, %s33
    %p37 = pneg %p31
    %p38 = scmp.eq.s32.totalorder %s22, 1
    %p39 = por %p37, %p38
    %p40 = scmp.ne.s32.totalorder %s32, %s35
    %p41 = scmp.eq.s32.totalorder %s22, 0
    %p42 = por %p40, %p41
    %p43 = scmp.ne.s32.totalorder %s32, %s35
    %p44 = scmp.eq.s32.totalorder %s27, 1
    %p45 = por %p43, %p44
    %p46 = scmp.ne.s32.totalorder %s35, %s36
    %p47 = scmp.eq.s32.totalorder %s27, 0
    %p48 = por %p46, %p47
    %p49 = scmp.ne.s32.totalorder %s35, %s36
    %p50 = scmp.eq.s32.totalorder %s28, 1
    %p51 = por %p49, %p50
    %p53 = scmp.ne.s32.totalorder %s36, %s52
    %p54 = scmp.eq.s32.totalorder %s28, 0
    %p55 = por %p53, %p54
    %s56 = ssub.s32 %s22, %s29
    %p57 = scmp.eq.s32.totalorder %s56, 0
    %s59 = sadd.s32 %s58, 1
    %s60 = scalar_select %p57, %s58, %s59
    %p63 = pneg %p57
    %p64 = scmp.eq.s32.totalorder %s22, 1
    %p65 = por %p63, %p64
    %p66 = scmp.ne.s32.totalorder %s58, %s61
    %p67 = scmp.eq.s32.totalorder %s22, 0
    %p68 = por %p66, %p67
    %p69 = scmp.ne.s32.totalorder %s58, %s61
    %p70 = scmp.eq.s32.totalorder %s27, 1
    %p71 = por %p69, %p70
    %p72 = scmp.ne.s32.totalorder %s61, %s62
    %p73 = scmp.eq.s32.totalorder %s27, 0
    %p74 = por %p72, %p73
    %p75 = scmp.ne.s32.totalorder %s61, %s62
    %p76 = scmp.eq.s32.totalorder %s28, 1
    %p77 = por %p75, %p76
    %p79 = scmp.ne.s32.totalorder %s62, %s78
    %p80 = scmp.eq.s32.totalorder %s28, 0
    %p81 = por %p79, %p80
    %s83 = sadd.s32 %s82, 1
    %p86 = scmp.eq.s32.totalorder %s22, 1
    %p87 = scmp.ne.s32.totalorder %s82, %s84
    %p88 = scmp.eq.s32.totalorder %s22, 0
    %p89 = por %p87, %p88
    %p90 = scmp.ne.s32.totalorder %s82, %s84
    %p91 = scmp.eq.s32.totalorder %s27, 1
    %p92 = por %p90, %p91
    %p93 = scmp.ne.s32.totalorder %s84, %s85
    %p94 = scmp.eq.s32.totalorder %s27, 0
    %p95 = por %p93, %p94
    %p96 = scmp.ne.s32.totalorder %s84, %s85
    %p97 = scmp.eq.s32.totalorder %s28, 1
    %p98 = por %p96, %p97
    %p100 = scmp.ne.s32.totalorder %s85, %s99
    %p101 = scmp.eq.s32.totalorder %s28, 0
    %p102 = por %p100, %p101
    %s104 = sadd.s32 %s103, 1
    %p107 = scmp.eq.s32.totalorder %s22, 1
    %p108 = scmp.ne.s32.totalorder %s103, %s105
    %p109 = scmp.eq.s32.totalorder %s22, 0
    %p110 = por %p108, %p109
    %p111 = scmp.ne.s32.totalorder %s103, %s105
    %p112 = scmp.eq.s32.totalorder %s27, 1
    %p113 = por %p111, %p112
    %p114 = scmp.ne.s32.totalorder %s105, %s106
    %p115 = scmp.eq.s32.totalorder %s27, 0
    %p116 = por %p114, %p115
    %p117 = scmp.ne.s32.totalorder %s105, %s106
    %p118 = scmp.eq.s32.totalorder %s28, 1
    %p119 = por %p117, %p118
    %p121 = scmp.ne.s32.totalorder %s106, %s120
    %p122 = scmp.eq.s32.totalorder %s28, 0
    %p123 = por %p121, %p122
    %s125 = sadd.s32 %s124, 1
    %p128 = scmp.eq.s32.totalorder %s22, 1
    %p129 = scmp.ne.s32.totalorder %s124, %s126
    %p130 = scmp.eq.s32.totalorder %s22, 0
    %p131 = por %p129, %p130
    %p132 = scmp.ne.s32.totalorder %s124, %s126
    %p133 = scmp.eq.s32.totalorder %s27, 1
    %p134 = por %p132, %p133
    %p135 = scmp.ne.s32.totalorder %s126, %s127
    %p136 = scmp.eq.s32.totalorder %s27, 0
    %p137 = por %p135, %p136
    %p138 = scmp.ne.s32.totalorder %s126, %s127
    %p139 = scmp.eq.s32.totalorder %s28, 1
    %p140 = por %p138, %p139
    %p142 = scmp.ne.s32.totalorder %s127, %s141
    %p143 = scmp.eq.s32.totalorder %s28, 0
    %p144 = por %p142, %p143
    %s146 = sadd.s32 %s145, 1
    %p149 = scmp.eq.s32.totalorder %s22, 1
    %p150 = scmp.ne.s32.totalorder %s145, %s147
    %p151 = scmp.eq.s32.totalorder %s22, 0
    %p152 = por %p150, %p151
    %p153 = scmp.ne.s32.totalorder %s145, %s147
    %p154 = scmp.eq.s32.totalorder %s27, 1
    %p155 = por %p153, %p154
    %p156 = scmp.ne.s32.totalorder %s147, %s148
    %p157 = scmp.eq.s32.totalorder %s27, 0
    %p158 = por %p156, %p157
    %p159 = scmp.ne.s32.totalorder %s147, %s148
    %p160 = scmp.eq.s32.totalorder %s28, 1
    %p161 = por %p159, %p160
    %p163 = scmp.ne.s32.totalorder %s148, %s162
    %p164 = scmp.eq.s32.totalorder %s28, 0
    %p165 = por %p163, %p164
    %s167 = sadd.s32 %s166, 1
    %p170 = scmp.eq.s32.totalorder %s22, 1
    %p171 = scmp.ne.s32.totalorder %s166, %s168
    %p172 = scmp.eq.s32.totalorder %s22, 0
    %p173 = por %p171, %p172
    %p174 = scmp.ne.s32.totalorder %s166, %s168
    %p175 = scmp.eq.s32.totalorder %s27, 1
    %p176 = por %p174, %p175
    %p177 = scmp.ne.s32.totalorder %s168, %s169
    %p178 = scmp.eq.s32.totalorder %s27, 0
    %p179 = por %p177, %p178
    %p180 = scmp.ne.s32.totalorder %s168, %s169
    %p181 = scmp.eq.s32.totalorder %s28, 1
    %p182 = por %p180, %p181
    %p184 = scmp.ne.s32.totalorder %s169, %s183
    %p185 = scmp.eq.s32.totalorder %s28, 0
    %p186 = por %p184, %p185
    %s188 = sadd.s32 %s187, 1
    %p191 = scmp.eq.s32.totalorder %s22, 1
    %p192 = scmp.ne.s32.totalorder %s187, %s189
    %p193 = scmp.eq.s32.totalorder %s22, 0
    %p194 = por %p192, %p193
    %p195 = scmp.ne.s32.totalorder %s187, %s189
    %p196 = scmp.eq.s32.totalorder %s27, 1
    %p197 = por %p195, %p196
    %p198 = scmp.ne.s32.totalorder %s189, %s190
    %p199 = scmp.eq.s32.totalorder %s27, 0
    %p200 = por %p198, %p199
    %p201 = scmp.ne.s32.totalorder %s189, %s190
    %p202 = scmp.eq.s32.totalorder %s28, 1
    %p203 = por %p201, %p202
    %p205 = scmp.ne.s32.totalorder %s190, %s204
    %p206 = scmp.eq.s32.totalorder %s28, 0
    %p207 = por %p205, %p206
    %s209 = sadd.s32 %s208, 1
    %p212 = scmp.eq.s32.totalorder %s22, 1
    %p213 = scmp.ne.s32.totalorder %s208, %s210
    %p214 = scmp.eq.s32.totalorder %s22, 0
    %p215 = por %p213, %p214
    %p216 = scmp.ne.s32.totalorder %s208, %s210
    %p217 = scmp.eq.s32.totalorder %s27, 1
    %p218 = por %p216, %p217
    %p219 = scmp.ne.s32.totalorder %s210, %s211
    %p220 = scmp.eq.s32.totalorder %s27, 0
    %p221 = por %p219, %p220
    %p222 = scmp.ne.s32.totalorder %s210, %s211
    %p223 = scmp.eq.s32.totalorder %s28, 1
    %p224 = por %p222, %p223
    %p226 = scmp.ne.s32.totalorder %s211, %s225
    %p227 = scmp.eq.s32.totalorder %s28, 0
    %p228 = por %p226, %p227
    %s230 = sadd.s32 %s229, 1
    %p233 = scmp.eq.s32.totalorder %s22, 1
    %p234 = scmp.ne.s32.totalorder %s229, %s231
    %p235 = scmp.eq.s32.totalorder %s22, 0
    %p236 = por %p234, %p235
    %p237 = scmp.ne.s32.totalorder %s229, %s231
    %p238 = scmp.eq.s32.totalorder %s27, 1
    %p239 = por %p237, %p238
    %p240 = scmp.ne.s32.totalorder %s231, %s232
    %p241 = scmp.eq.s32.totalorder %s27, 0
    %p242 = por %p240, %p241
    %p243 = scmp.ne.s32.totalorder %s231, %s232
    %p244 = scmp.eq.s32.totalorder %s28, 1
    %p245 = por %p243, %p244
    %p247 = scmp.ne.s32.totalorder %s232, %s246
    %p248 = scmp.eq.s32.totalorder %s28, 0
    %p249 = por %p247, %p248
    %s251 = sadd.s32 %s250, 1
    %p254 = scmp.eq.s32.totalorder %s22, 1
    %p255 = scmp.ne.s32.totalorder %s250, %s252
    %p256 = scmp.eq.s32.totalorder %s22, 0
    %p257 = por %p255, %p256
    %p258 = scmp.ne.s32.totalorder %s250, %s252
    %p259 = scmp.eq.s32.totalorder %s27, 1
    %p260 = por %p258, %p259
    %p261 = scmp.ne.s32.totalorder %s252, %s253
    %p262 = scmp.eq.s32.totalorder %s27, 0
    %p263 = por %p261, %p262
    %p264 = scmp.ne.s32.totalorder %s252, %s253
    %p265 = scmp.eq.s32.totalorder %s28, 1
    %p266 = por %p264, %p265
    %p268 = scmp.ne.s32.totalorder %s253, %s267
    %p269 = scmp.eq.s32.totalorder %s28, 0
    %p270 = por %p268, %p269
    %s272 = sadd.s32 %s271, 1
    %p275 = scmp.eq.s32.totalorder %s22, 1
    %p276 = scmp.ne.s32.totalorder %s271, %s273
    %p277 = scmp.eq.s32.totalorder %s22, 0
    %p278 = por %p276, %p277
    %p279 = scmp.ne.s32.totalorder %s271, %s273
    %p280 = scmp.eq.s32.totalorder %s27, 1
    %p281 = por %p279, %p280
    %p282 = scmp.ne.s32.totalorder %s273, %s274
    %p283 = scmp.eq.s32.totalorder %s27, 0
    %p284 = por %p282, %p283
    %p285 = scmp.ne.s32.totalorder %s273, %s274
    %p286 = scmp.eq.s32.totalorder %s28, 1
    %p287 = por %p285, %p286
    %p289 = scmp.ne.s32.totalorder %s274, %s288
    %p290 = scmp.eq.s32.totalorder %s28, 0
    %p291 = por %p289, %p290
    %s293 = sadd.s32 %s292, 1
    %p296 = scmp.eq.s32.totalorder %s22, 1
    %p297 = scmp.ne.s32.totalorder %s292, %s294
    %p298 = scmp.eq.s32.totalorder %s22, 0
    %p299 = por %p297, %p298
    %p300 = scmp.ne.s32.totalorder %s292, %s294
    %p301 = scmp.eq.s32.totalorder %s27, 1
    %p302 = por %p300, %p301
    %p303 = scmp.ne.s32.totalorder %s294, %s295
    %p304 = scmp.eq.s32.totalorder %s27, 0
    %p305 = por %p303, %p304
    %p306 = scmp.ne.s32.totalorder %s294, %s295
    %p307 = scmp.eq.s32.totalorder %s28, 1
    %p308 = por %p306, %p307
    %p310 = scmp.ne.s32.totalorder %s295, %s309
    %p311 = scmp.eq.s32.totalorder %s28, 0
    %p312 = por %p310, %p311
    %s314 = sadd.s32 %s313, 1
    %p317 = scmp.eq.s32.totalorder %s22, 1
    %p318 = scmp.ne.s32.totalorder %s313, %s315
    %p319 = scmp.eq.s32.totalorder %s22, 0
    %p320 = por %p318, %p319
    %p321 = scmp.ne.s32.totalorder %s313, %s315
    %p322 = scmp.eq.s32.totalorder %s27, 1
    %p323 = por %p321, %p322
    %p324 = scmp.ne.s32.totalorder %s315, %s316
    %p325 = scmp.eq.s32.totalorder %s27, 0
    %p326 = por %p324, %p325
    %p327 = scmp.ne.s32.totalorder %s315, %s316
    %p328 = scmp.eq.s32.totalorder %s28, 1
    %p329 = por %p327, %p328
    %p331 = scmp.ne.s32.totalorder %s316, %s330
    %p332 = scmp.eq.s32.totalorder %s28, 0
    %p333 = por %p331, %p332
    %s334 = ssub.s32 %s22, %s29
    %p335 = scmp.eq.s32.totalorder %s334, 0
    %s337 = sadd.s32 %s336, 1
    %s338 = scalar_select %p335, %s336, %s337
    %p341 = pneg %p335
    %p342 = scmp.eq.s32.totalorder %s22, 1
    %p343 = por %p341, %p342
    %p344 = scmp.ne.s32.totalorder %s336, %s339
    %p345 = scmp.eq.s32.totalorder %s22, 0
    %p346 = por %p344, %p345
    %p347 = scmp.ne.s32.totalorder %s336, %s339
    %p348 = scmp.eq.s32.totalorder %s27, 1
    %p349 = por %p347, %p348
    %p350 = scmp.ne.s32.totalorder %s339, %s340
    %p351 = scmp.eq.s32.totalorder %s27, 0
    %p352 = por %p350, %p351
    %p353 = scmp.ne.s32.totalorder %s339, %s340
    %p354 = scmp.eq.s32.totalorder %s28, 1
    %p355 = por %p353, %p354
    %p357 = scmp.ne.s32.totalorder %s340, %s356
    %p358 = scmp.eq.s32.totalorder %s28, 0
    %p359 = por %p357, %p358
    %s360 = ssub.s32 %s22, %s29
    %p361 = scmp.eq.s32.totalorder %s360, 0
    %s363 = sadd.s32 %s362, 1
    %s364 = scalar_select %p361, %s362, %s363
    %p367 = pneg %p361
    %p368 = scmp.eq.s32.totalorder %s22, 1
    %p369 = por %p367, %p368
    %p370 = scmp.ne.s32.totalorder %s362, %s365
    %p371 = scmp.eq.s32.totalorder %s22, 0
    %p372 = por %p370, %p371
    %p373 = scmp.ne.s32.totalorder %s362, %s365
    %p374 = scmp.eq.s32.totalorder %s27, 1
    %p375 = por %p373, %p374
    %p376 = scmp.ne.s32.totalorder %s365, %s366
    %p377 = scmp.eq.s32.totalorder %s27, 0
    %p378 = por %p376, %p377
    %p379 = scmp.ne.s32.totalorder %s365, %s366
    %p380 = scmp.eq.s32.totalorder %s28, 1
    %p381 = por %p379, %p380
    %p383 = scmp.ne.s32.totalorder %s366, %s382
    %p384 = scmp.eq.s32.totalorder %s28, 0
    %p385 = por %p383, %p384
    %p386 = scmp.le.s32.totalorder 1, %s22
    %p387 = scmp.lt.s32.totalorder %s22, 3
    %p388 = pnand %p386, %p387
    %p389 = pneg %p388
    // Predicated region
    $region9: #{tpu_custom_call.1} parent=5 // pred_check
      _
    $region10: #{tpu_custom_call.1} parent=5 // pred_check_branch
      %391 = sbr.rel (%p388) target = $region12
    $region11: #{tpu_custom_call.1} parent=5 // pred_region
      %s392 = ssub.s32 %s22, 1
      // Predicated region
      $region13: #{tpu_custom_call.1} parent=11 // pred_check
        %p393 = pneg %p95
      $region14: #{tpu_custom_call.1} parent=11 // pred_check_branch
        %395 = sbr.rel (%p393) target = $region16
      $region15: #{tpu_custom_call.1} parent=11 // pred_region
        _
      $region16: #{tpu_custom_call.1} parent=11 // pred_fallthru
        _
      // Predicated region
      $region17: #{tpu_custom_call.1} parent=11 // pred_check
        %p396 = pneg %p116
      $region18: #{tpu_custom_call.1} parent=11 // pred_check_branch
        %398 = sbr.rel (%p396) target = $region20
      $region19: #{tpu_custom_call.1} parent=11 // pred_region
        _
      $region20: #{tpu_custom_call.1} parent=11 // pred_fallthru
        _
      // Predicated region
      $region21: #{tpu_custom_call.1} parent=11 // pred_check
        %p399 = pneg %p137
      $region22: #{tpu_custom_call.1} parent=11 // pred_check_branch
        %401 = sbr.rel (%p399) target = $region24
      $region23: #{tpu_custom_call.1} parent=11 // pred_region
        _
      $region24: #{tpu_custom_call.1} parent=11 // pred_fallthru
        _
      // Predicated region
      $region25: #{tpu_custom_call.1} parent=11 // pred_check
        %p402 = pneg %p158
      $region26: #{tpu_custom_call.1} parent=11 // pred_check_branch
        %404 = sbr.rel (%p402) target = $region28
      $region27: #{tpu_custom_call.1} parent=11 // pred_region
        _
      $region28: #{tpu_custom_call.1} parent=11 // pred_fallthru
        _
      // Predicated region
      $region29: #{tpu_custom_call.1} parent=11 // pred_check
        %p405 = pneg %p179
      $region30: #{tpu_custom_call.1} parent=11 // pred_check_branch
        %407 = sbr.rel (%p405) target = $region32
      $region31: #{tpu_custom_call.1} parent=11 // pred_region
        _
      $region32: #{tpu_custom_call.1} parent=11 // pred_fallthru
        _
      // Predicated region
      $region33: #{tpu_custom_call.1} parent=11 // pred_check
        %p408 = pneg %p200
      $region34: #{tpu_custom_call.1} parent=11 // pred_check_branch
        %410 = sbr.rel (%p408) target = $region36
      $region35: #{tpu_custom_call.1} parent=11 // pred_region
        _
      $region36: #{tpu_custom_call.1} parent=11 // pred_fallthru
        _
      // Predicated region
      $region37: #{tpu_custom_call.1} parent=11 // pred_check
        %p411 = pneg %p221
      $region38: #{tpu_custom_call.1} parent=11 // pred_check_branch
        %413 = sbr.rel (%p411) target = $region40
      $region39: #{tpu_custom_call.1} parent=11 // pred_region
        _
      $region40: #{tpu_custom_call.1} parent=11 // pred_fallthru
        _
      // Predicated region
      $region41: #{tpu_custom_call.1} parent=11 // pred_check
        %p414 = pneg %p242
      $region42: #{tpu_custom_call.1} parent=11 // pred_check_branch
        %416 = sbr.rel (%p414) target = $region44
      $region43: #{tpu_custom_call.1} parent=11 // pred_region
        _
      $region44: #{tpu_custom_call.1} parent=11 // pred_fallthru
        _
      // Predicated region
      $region45: #{tpu_custom_call.1} parent=11 // pred_check
        %p417 = pneg %p263
      $region46: #{tpu_custom_call.1} parent=11 // pred_check_branch
        %419 = sbr.rel (%p417) target = $region48
      $region47: #{tpu_custom_call.1} parent=11 // pred_region
        _
      $region48: #{tpu_custom_call.1} parent=11 // pred_fallthru
        _
      // Predicated region
      $region49: #{tpu_custom_call.1} parent=11 // pred_check
        %p420 = pneg %p284
      $region50: #{tpu_custom_call.1} parent=11 // pred_check_branch
        %422 = sbr.rel (%p420) target = $region52
      $region51: #{tpu_custom_call.1} parent=11 // pred_region
        _
      $region52: #{tpu_custom_call.1} parent=11 // pred_fallthru
        _
      // Predicated region
      $region53: #{tpu_custom_call.1} parent=11 // pred_check
        %p423 = pneg %p305
      $region54: #{tpu_custom_call.1} parent=11 // pred_check_branch
        %425 = sbr.rel (%p423) target = $region56
      $region55: #{tpu_custom_call.1} parent=11 // pred_region
        _
      $region56: #{tpu_custom_call.1} parent=11 // pred_fallthru
        _
      // Predicated region
      $region57: #{tpu_custom_call.1} parent=11 // pred_check
        %p426 = pneg %p326
      $region58: #{tpu_custom_call.1} parent=11 // pred_check_branch
        %428 = sbr.rel (%p426) target = $region60
      $region59: #{tpu_custom_call.1} parent=11 // pred_region
        _
      $region60: #{tpu_custom_call.1} parent=11 // pred_fallthru
        _
    $region12: #{tpu_custom_call.1} parent=5 // pred_fallthru
      _
    %p429 = scmp.lt.s32.totalorder %s22, 2
    // Predicated region
    $region61: #{tpu_custom_call.1} parent=5 // pred_check
      %p430 = pneg %p429
    $region62: #{tpu_custom_call.1} parent=5 // pred_check_branch
      %432 = sbr.rel (%p430) target = $region64
    $region63: #{tpu_custom_call.1} parent=5 // pred_region
      // Predicated region
      $region65: #{tpu_custom_call.1} parent=63 // pred_check
        %p433 = pneg %p42
      $region66: #{tpu_custom_call.1} parent=63 // pred_check_branch
        %435 = sbr.rel (%p433) target = $region68
      $region67: #{tpu_custom_call.1} parent=63 // pred_region
        %s436 = smul.u32 16, %s22
        %p437 = scmp.lt.s32.totalorder %s436, 31
        %s438 = scalar_select %p437, %s436, 31
        %s439 = smul.addr %s438, 8
        %s440 = scalar_lea.vmem %s0, %s439
        %s441 = smul.u32 16, %s22
      $region68: #{tpu_custom_call.1} parent=63 // pred_fallthru
        _
      // Predicated region
      $region69: #{tpu_custom_call.1} parent=63 // pred_check
        %p442 = pneg %p68
      $region70: #{tpu_custom_call.1} parent=63 // pred_check_branch
        %444 = sbr.rel (%p442) target = $region72
      $region71: #{tpu_custom_call.1} parent=63 // pred_region
        %s445 = smul.u32 16, %s22
        %p446 = scmp.lt.s32.totalorder %s445, 31
        %s447 = scalar_select %p446, %s445, 31
        %s448 = smul.addr %s447, 8
        %s449 = scalar_lea.vmem %s1, %s448
        %s450 = smul.u32 16, %s22
      $region72: #{tpu_custom_call.1} parent=63 // pred_fallthru
        _
    $region64: #{tpu_custom_call.1} parent=5 // pred_fallthru
      _
    %p451 = scmp.le.s32.totalorder 1, %s22
    %p452 = scmp.lt.s32.totalorder %s22, 3
    %p453 = pnand %p451, %p452
    %p454 = pneg %p453
    // Predicated region
    $region73: #{tpu_custom_call.1} parent=5 // pred_check
      _
    $region74: #{tpu_custom_call.1} parent=5 // pred_check_branch
      %456 = sbr.rel (%p453) target = $region76
    $region75: #{tpu_custom_call.1} parent=5 // pred_region
      %s457 = ssub.s32 %s22, 1
      %s458 = smul.u32 16, %s27
      %p459 = scmp.lt.s32.totalorder %s458, 31
      %s460 = scalar_select %p459, %s458, 31
      %s461 = smul.addr %s460, 8
      %s462 = scalar_lea.vmem %s0, %s461
      %p463 = pneg %p48
      %p464 = pneg %p45
      %s465 = smul.u32 16, %s27
      %p466 = scmp.lt.s32.totalorder %s465, 31
      %s467 = scalar_select %p466, %s465, 31
      %s468 = smul.addr %s467, 8
      %s469 = scalar_lea.vmem %s1, %s468
      %p470 = pneg %p74
      %p471 = pneg %p71
      %p472 = pneg %p95
      %p473 = pneg %p92
      %p474 = pneg %p116
      %p475 = pneg %p113
      %p476 = pneg %p137
      %p477 = pneg %p134
      %p478 = pneg %p158
      %p479 = pneg %p155
      %p480 = pneg %p179
      %p481 = pneg %p176
      %p482 = pneg %p200
      %p483 = pneg %p197
      %p484 = pneg %p221
      %p485 = pneg %p218
      %p486 = pneg %p242
      %p487 = pneg %p239
      %p488 = pneg %p263
      %p489 = pneg %p260
      %p490 = pneg %p284
      %p491 = pneg %p281
      %p492 = pneg %p305
      %p493 = pneg %p302
      %p494 = pneg %p326
      %p495 = pneg %p323
      %p496 = pneg %p352
      %p497 = pneg %p349
      %s498 = smul.u32 16, %s27
      %p499 = scmp.lt.s32.totalorder %s498, 31
      %s500 = scalar_select %p499, %s498, 31
      %s501 = smul.addr %s500, 8
      %s502 = scalar_lea.vmem %s14, %s501
      %p503 = pneg %p378
      %p504 = pneg %p375
      %s505 = smul.u32 16, %s27
      %p506 = scmp.lt.s32.totalorder %s505, 31
      %s507 = scalar_select %p506, %s505, 31
      %s508 = smul.addr %s507, 8
      %s509 = scalar_lea.vmem %s15, %s508
      %s510 = smul.u32 16, %s27
      %p511 = scmp.lt.s32.totalorder %s510, 31
      %s512 = scalar_select %p511, %s510, 31
      %s513 = smul.addr %s512, 8
      %s514 = scalar_lea.vmem %s0, %s513
      %s515 = smul.u32 16, %s27
      %s516 = smul.u32 16, %s27
      %p517 = scmp.lt.s32.totalorder %s516, 31
      %s518 = scalar_select %p517, %s516, 31
      %s519 = smul.addr %s518, 8
      %s520 = scalar_lea.vmem %s1, %s519
      %s521 = smul.u32 16, %s27
      %s522 = smul.u32 16, %s27
      %p523 = scmp.lt.s32.totalorder %s522, 31
      %s524 = scalar_select %p523, %s522, 31
      %s525 = smul.addr %s524, 8
      %s526 = scalar_lea.vmem %s14, %s525
      %s527 = smul.u32 16, %s27
      %s528 = smul.u32 16, %s27
      %p529 = scmp.lt.s32.totalorder %s528, 31
      %s530 = scalar_select %p529, %s528, 31
      %s531 = smul.addr %s530, 8
      %s532 = scalar_lea.vmem %s15, %s531
      %s533 = smul.u32 16, %s27
      %v534 = vld [vmem:[%s514] sm:$0xff]
      %v535 = vld [vmem:[%s514 + $0x8] sm:$0xff]
      %v536 = vld [vmem:[%s514 + $0x10] sm:$0xff]
      %v537 = vld [vmem:[%s514 + $0x18] sm:$0xff]
      %v538 = vld [vmem:[%s514 + $0x20] sm:$0xff]
      %v539 = vld [vmem:[%s514 + $0x28] sm:$0xff]
      %v540 = vld [vmem:[%s514 + $0x30] sm:$0xff]
      %v541 = vld [vmem:[%s514 + $0x38] sm:$0xff]
      %v542 = vld [vmem:[%s514 + $0x40] sm:$0xff]
      %v543 = vld [vmem:[%s514 + $0x48] sm:$0xff]
      %v544 = vld [vmem:[%s514 + $0x50] sm:$0xff]
      %v545 = vld [vmem:[%s514 + $0x58] sm:$0xff]
      %v546 = vld [vmem:[%s514 + $0x60] sm:$0xff]
      %v547 = vld [vmem:[%s514 + $0x68] sm:$0xff]
      %v548 = vld [vmem:[%s514 + $0x70] sm:$0xff]
      %v549 = vld [vmem:[%s514 + $0x78] sm:$0xff]
      %v550 = vld [vmem:[%s2] sm:$0xff]
      %v551 = vld [vmem:[%s2 + $0x8] sm:$0xff]
      %v552 = vld [vmem:[%s2 + $0x10] sm:$0xff]
      %v553 = vld [vmem:[%s2 + $0x18] sm:$0xff]
      %v554 = vld [vmem:[%s3] sm:$0x1]
      %v556 = vlaneseq
      %v557 = vshrl.u32 %v556, 7
      %v558 = vsub.s32 0, %v557
      %v559 = vrot.slane %v554, %v558
      %vm561 = vcmask 261120
      %v563 = vsel %vm561, %v534, 0
      %v566 = vsel %vm561, %v535, 0
      %v569 = vsel %vm561, %v536, 0
      %v572 = vsel %vm561, %v537, 0
      %v575 = vsel %vm561, %v538, 0
      %v578 = vsel %vm561, %v539, 0
      %v581 = vsel %vm561, %v540, 0
      %v584 = vsel %vm561, %v541, 0
      %v587 = vsel %vm561, %v542, 0
      %v590 = vsel %vm561, %v543, 0
      %v593 = vsel %vm561, %v544, 0
      %v596 = vsel %vm561, %v545, 0
      %v599 = vsel %vm561, %v546, 0
      %v602 = vsel %vm561, %v547, 0
      %v605 = vsel %vm561, %v548, 0
      %v608 = vsel %vm561, %v549, 0
      %610 = vmatprep.subr.mxu0 0.0
      %611 = vmatpush1.msra.mxu0 %v550
      %612 = vmatprep.subr.mxu0 0.0
      %613 = vmatpush1.msra.mxu0 %v551
      %614 = vmatprep.subr.mxu0 0.0
      %615 = vmatpush1.msra.mxu0 %v552
      %616 = vmatprep.subr.mxu0 0.0
      %617 = vmatpush1.msra.mxu0 %v553
      %618 = vmatprep.subr.mxu0 0.0
      %619 = vmatpush1.msra.mxu0 0.0
      %620 = vmatprep.subr.mxu0 0.0
      %621 = vmatpush1.msra.mxu0 0.0
      %622 = vmatprep.subr.mxu0 0.0
      %623 = vmatpush1.msra.mxu0 0.0
      %624 = vmatprep.subr.mxu0 0.0
      %625 = vmatpush1.msra.mxu0 0.0
      %626 = vmatprep.subr.mxu0 0.0
      %627 = vmatpush1.msra.mxu0 0.0
      %628 = vmatprep.subr.mxu0 0.0
      %629 = vmatpush1.msra.mxu0 0.0
      %630 = vmatprep.subr.mxu0 0.0
      %631 = vmatpush1.msra.mxu0 0.0
      %632 = vmatprep.subr.mxu0 0.0
      %633 = vmatpush1.msra.mxu0 0.0
      %634 = vmatprep.subr.mxu0 0.0
      %635 = vmatpush1.msra.mxu0 0.0
      %636 = vmatprep.subr.mxu0 0.0
      %637 = vmatpush1.msra.mxu0 0.0
      %638 = vmatprep.subr.mxu0 0.0
      %639 = vmatpush1.msra.mxu0 0.0
      %640 = vmatprep.subr.mxu0 0.0
      %641 = vmatpush1.msra.mxu0 0.0
      %642 = vmatprep.subr.mxu0 0.0
      %643 = vmatpush1.msra.mxu0 0.0
      %644 = vmatprep.subr.mxu0 0.0
      %645 = vmatpush1.msra.mxu0 0.0
      %646 = vmatprep.subr.mxu0 0.0
      %647 = vmatpush1.msra.mxu0 0.0
      %648 = vmatprep.subr.mxu0 0.0
      %649 = vmatpush1.msra.mxu0 0.0
      %650 = vmatprep.subr.mxu0 0.0
      %651 = vmatpush1.msra.mxu0 0.0
      %652 = vmatprep.subr.mxu0 0.0
      %653 = vmatpush1.msra.mxu0 0.0
      %654 = vmatprep.subr.mxu0 0.0
      %655 = vmatpush1.msra.mxu0 0.0
      %656 = vmatprep.subr.mxu0 0.0
      %657 = vmatpush1.msra.mxu0 0.0
      %658 = vmatprep.subr.mxu0 0.0
      %659 = vmatpush1.msra.mxu0 0.0
      %660 = vmatprep.subr.mxu0 0.0
      %661 = vmatpush1.msra.mxu0 0.0
      %662 = vmatprep.subr.mxu0 0.0
      %663 = vmatpush1.msra.mxu0 0.0
      %664 = vmatprep.subr.mxu0 0.0
      %665 = vmatpush1.msra.mxu0 0.0
      %666 = vmatprep.subr.mxu0 0.0
      %667 = vmatpush1.msra.mxu0 0.0
      %668 = vmatprep.subr.mxu0 0.0
      %669 = vmatpush1.msra.mxu0 0.0
      %670 = vmatprep.subr.mxu0 0.0
      %671 = vmatpush1.msra.mxu0 0.0
      %672 = vmatprep.subr.mxu0 0.0
      %673 = vmatpush1.msra.mxu0 0.0
      %674 = vmatprep.mubr.f32.mxu0 0.0
      %675 = vmatmul.mubr.f32.gmra.mrb[0].mxu0 %v563
      %v676 = vpop.f32.mrb[0].mxu0
      %v677 = vadd.f32 %v559, %v676
      %v678 = vpop.f32.mrb[0].mxu0
      %679 = vmatprep.mubr.f32.mxu0 0.0
      %680 = vmatmul.mubr.f32.gmra.mrb[0].mxu0 %v566
      %v681 = vpop.f32.mrb[0].mxu0
      %v682 = vadd.f32 %v559, %v681
      %v683 = vpop.f32.mrb[0].mxu0
      %684 = vmatprep.mubr.f32.mxu0 0.0
      %685 = vmatmul.mubr.f32.gmra.mrb[0].mxu0 %v569
      %v686 = vpop.f32.mrb[0].mxu0
      %v687 = vadd.f32 %v559, %v686
      %v688 = vpop.f32.mrb[0].mxu0
      %689 = vmatprep.mubr.f32.mxu0 0.0
      %690 = vmatmul.mubr.f32.gmra.mrb[0].mxu0 %v572
      %v691 = vpop.f32.mrb[0].mxu0
      %v692 = vadd.f32 %v559, %v691
      %v693 = vpop.f32.mrb[0].mxu0
      %694 = vmatprep.mubr.f32.mxu0 0.0
      %695 = vmatmul.mubr.f32.gmra.mrb[0].mxu0 %v575
      %v696 = vpop.f32.mrb[0].mxu0
      %v697 = vadd.f32 %v559, %v696
      %v698 = vpop.f32.mrb[0].mxu0
      %699 = vmatprep.mubr.f32.mxu0 0.0
      %700 = vmatmul.mubr.f32.gmra.mrb[0].mxu0 %v578
      %v701 = vpop.f32.mrb[0].mxu0
      %v702 = vadd.f32 %v559, %v701
      %v703 = vpop.f32.mrb[0].mxu0
      %704 = vmatprep.mubr.f32.mxu0 0.0
      %705 = vmatmul.mubr.f32.gmra.mrb[0].mxu0 %v581
      %v706 = vpop.f32.mrb[0].mxu0
      %v707 = vadd.f32 %v559, %v706
      %v708 = vpop.f32.mrb[0].mxu0
      %709 = vmatprep.mubr.f32.mxu0 0.0
      %710 = vmatmul.mubr.f32.gmra.mrb[0].mxu0 %v584
      %v711 = vpop.f32.mrb[0].mxu0
      %v712 = vadd.f32 %v559, %v711
      %v713 = vpop.f32.mrb[0].mxu0
      %714 = vmatprep.mubr.f32.mxu0 0.0
      %715 = vmatmul.mubr.f32.gmra.mrb[0].mxu0 %v587
      %v716 = vpop.f32.mrb[0].mxu0
      %v717 = vadd.f32 %v559, %v716
      %v718 = vpop.f32.mrb[0].mxu0
      %719 = vmatprep.mubr.f32.mxu0 0.0
      %720 = vmatmul.mubr.f32.gmra.mrb[0].mxu0 %v590
      %v721 = vpop.f32.mrb[0].mxu0
      %v722 = vadd.f32 %v559, %v721
      %v723 = vpop.f32.mrb[0].mxu0
      %724 = vmatprep.mubr.f32.mxu0 0.0
      %725 = vmatmul.mubr.f32.gmra.mrb[0].mxu0 %v593
      %v726 = vpop.f32.mrb[0].mxu0
      %v727 = vadd.f32 %v559, %v726
      %v728 = vpop.f32.mrb[0].mxu0
      %729 = vmatprep.mubr.f32.mxu0 0.0
      %730 = vmatmul.mubr.f32.gmra.mrb[0].mxu0 %v596
      %v731 = vpop.f32.mrb[0].mxu0
      %v732 = vadd.f32 %v559, %v731
      %v733 = vpop.f32.mrb[0].mxu0
      %734 = vmatprep.mubr.f32.mxu0 0.0
      %735 = vmatmul.mubr.f32.gmra.mrb[0].mxu0 %v599
      %v736 = vpop.f32.mrb[0].mxu0
      %v737 = vadd.f32 %v559, %v736
      %v738 = vpop.f32.mrb[0].mxu0
      %739 = vmatprep.mubr.f32.mxu0 0.0
      %740 = vmatmul.mubr.f32.gmra.mrb[0].mxu0 %v602
      %v741 = vpop.f32.mrb[0].mxu0
      %v742 = vadd.f32 %v559, %v741
      %v743 = vpop.f32.mrb[0].mxu0
      %744 = vmatprep.mubr.f32.mxu0 0.0
      %745 = vmatmul.mubr.f32.gmra.mrb[0].mxu0 %v605
      %v746 = vpop.f32.mrb[0].mxu0
      %v747 = vadd.f32 %v559, %v746
      %v748 = vpop.f32.mrb[0].mxu0
      %749 = vmatprep.mubr.f32.mxu0 0.0
      %750 = vmatmul.mubr.f32.gmra.mrb[0].mxu0 %v608
      %v751 = vpop.f32.mrb[0].mxu0
      %v752 = vadd.f32 %v559, %v751
      %v753 = vpop.f32.mrb[0].mxu0
      %754 = vdwg.mxu0
      %v755 = vmax.f32 %v677, 0.0
      %v756 = vmax.f32 %v682, 0.0
      %v757 = vmax.f32 %v687, 0.0
      %v758 = vmax.f32 %v692, 0.0
      %v759 = vmax.f32 %v697, 0.0
      %v760 = vmax.f32 %v702, 0.0
      %v761 = vmax.f32 %v707, 0.0
      %v762 = vmax.f32 %v712, 0.0
      %v763 = vmax.f32 %v717, 0.0
      %v764 = vmax.f32 %v722, 0.0
      %v765 = vmax.f32 %v727, 0.0
      %v766 = vmax.f32 %v732, 0.0
      %v767 = vmax.f32 %v737, 0.0
      %v768 = vmax.f32 %v742, 0.0
      %v769 = vmax.f32 %v747, 0.0
      %v770 = vmax.f32 %v752, 0.0
      %v771 = vld [vmem:[%s4] sm:$0xff]
      %v772 = vld [vmem:[%s4 + $0x8] sm:$0xff]
      %v773 = vld [vmem:[%s4 + $0x10] sm:$0xff]
      %v774 = vld [vmem:[%s4 + $0x18] sm:$0xff]
      %v775 = vld [vmem:[%s4 + $0x20] sm:$0xff]
      %v776 = vld [vmem:[%s4 + $0x28] sm:$0xff]
      %v777 = vld [vmem:[%s4 + $0x30] sm:$0xff]
      %v778 = vld [vmem:[%s4 + $0x38] sm:$0xff]
      %v779 = vld [vmem:[%s5] sm:$0x1]
      %v781 = vlaneseq
      %v782 = vshrl.u32 %v781, 7
      %v783 = vsub.s32 0, %v782
      %v784 = vrot.slane %v779, %v783
      %vm786 = vcmask 523264
      %v788 = vsel %vm786, %v755, 0
      %v791 = vsel %vm786, %v756, 0
      %v794 = vsel %vm786, %v757, 0
      %v797 = vsel %vm786, %v758, 0
      %v800 = vsel %vm786, %v759, 0
      %v803 = vsel %vm786, %v760, 0
      %v806 = vsel %vm786, %v761, 0
      %v809 = vsel %vm786, %v762, 0
      %v812 = vsel %vm786, %v763, 0
      %v815 = vsel %vm786, %v764, 0
      %v818 = vsel %vm786, %v765, 0
      %v821 = vsel %vm786, %v766, 0
      %v824 = vsel %vm786, %v767, 0
      %v827 = vsel %vm786, %v768, 0
      %v830 = vsel %vm786, %v769, 0
      %v833 = vsel %vm786, %v770, 0
      %835 = vmatprep.subr.mxu0 0.0
      %836 = vmatpush1.msra.mxu0 %v771
      %837 = vmatprep.subr.mxu0 0.0
      %838 = vmatpush1.msra.mxu0 %v772
      %839 = vmatprep.subr.mxu0 0.0
      %840 = vmatpush1.msra.mxu0 %v773
      %841 = vmatprep.subr.mxu0 0.0
      %842 = vmatpush1.msra.mxu0 %v774
      %843 = vmatprep.subr.mxu0 0.0
      %844 = vmatpush1.msra.mxu0 %v775
      %845 = vmatprep.subr.mxu0 0.0
      %846 = vmatpush1.msra.mxu0 %v776
      %847 = vmatprep.subr.mxu0 0.0
      %848 = vmatpush1.msra.mxu0 %v777
      %849 = vmatprep.subr.mxu0 0.0
      %850 = vmatpush1.msra.mxu0 %v778
      %851 = vmatprep.subr.mxu0 0.0
      %852 = vmatpush1.msra.mxu0 0.0
      %853 = vmatprep.subr.mxu0 0.0
      %854 = vmatpush1.msra.mxu0 0.0
      %855 = vmatprep.subr.mxu0 0.0
      %856 = vmatpush1.msra.mxu0 0.0
      %857 = vmatprep.subr.mxu0 0.0
      %858 = vmatpush1.msra.mxu0 0.0
      %859 = vmatprep.subr.mxu0 0.0
      %860 = vmatpush1.msra.mxu0 0.0
      %861 = vmatprep.subr.mxu0 0.0
      %862 = vmatpush1.msra.mxu0 0.0
      %863 = vmatprep.subr.mxu0 0.0
      %864 = vmatpush1.msra.mxu0 0.0
      %865 = vmatprep.subr.mxu0 0.0
      %866 = vmatpush1.msra.mxu0 0.0
      %867 = vmatprep.subr.mxu0 0.0
      %868 = vmatpush1.msra.mxu0 0.0
      %869 = vmatprep.subr.mxu0 0.0
      %870 = vmatpush1.msra.mxu0 0.0
      %871 = vmatprep.subr.mxu0 0.0
      %872 = vmatpush1.msra.mxu0 0.0
      %873 = vmatprep.subr.mxu0 0.0
      %874 = vmatpush1.msra.mxu0 0.0
      %875 = vmatprep.subr.mxu0 0.0
      %876 = vmatpush1.msra.mxu0 0.0
      %877 = vmatprep.subr.mxu0 0.0
      %878 = vmatpush1.msra.mxu0 0.0
      %879 = vmatprep.subr.mxu0 0.0
      %880 = vmatpush1.msra.mxu0 0.0
      %881 = vmatprep.subr.mxu0 0.0
      %882 = vmatpush1.msra.mxu0 0.0
      %883 = vmatprep.subr.mxu0 0.0
      %884 = vmatpush1.msra.mxu0 0.0
      %885 = vmatprep.subr.mxu0 0.0
      %886 = vmatpush1.msra.mxu0 0.0
      %887 = vmatprep.subr.mxu0 0.0
      %888 = vmatpush1.msra.mxu0 0.0
      %889 = vmatprep.subr.mxu0 0.0
      %890 = vmatpush1.msra.mxu0 0.0
      %891 = vmatprep.subr.mxu0 0.0
      %892 = vmatpush1.msra.mxu0 0.0
      %893 = vmatprep.subr.mxu0 0.0
      %894 = vmatpush1.msra.mxu0 0.0
      %895 = vmatprep.subr.mxu0 0.0
      %896 = vmatpush1.msra.mxu0 0.0
      %897 = vmatprep.subr.mxu0 0.0
      %898 = vmatpush1.msra.mxu0 0.0
      %899 = vmatprep.mubr.f32.mxu0 0.0
      %900 = vmatmul.mubr.f32.gmra.mrb[0].mxu0 %v788
      %v901 = vpop.f32.mrb[0].mxu0
      %v902 = vadd.f32 %v784, %v901
      %v903 = vpop.f32.mrb[0].mxu0
      %904 = vmatprep.mubr.f32.mxu0 0.0
      %905 = vmatmul.mubr.f32.gmra.mrb[0].mxu0 %v791
      %v906 = vpop.f32.mrb[0].mxu0
      %v907 = vadd.f32 %v784, %v906
      %v908 = vpop.f32.mrb[0].mxu0
      %909 = vmatprep.mubr.f32.mxu0 0.0
      %910 = vmatmul.mubr.f32.gmra.mrb[0].mxu0 %v794
      %v911 = vpop.f32.mrb[0].mxu0
      %v912 = vadd.f32 %v784, %v911
      %v913 = vpop.f32.mrb[0].mxu0
      %914 = vmatprep.mubr.f32.mxu0 0.0
      %915 = vmatmul.mubr.f32.gmra.mrb[0].mxu0 %v797
      %v916 = vpop.f32.mrb[0].mxu0
      %v917 = vadd.f32 %v784, %v916
      %v918 = vpop.f32.mrb[0].mxu0
      %919 = vmatprep.mubr.f32.mxu0 0.0
      %920 = vmatmul.mubr.f32.gmra.mrb[0].mxu0 %v800
      %v921 = vpop.f32.mrb[0].mxu0
      %v922 = vadd.f32 %v784, %v921
      %v923 = vpop.f32.mrb[0].mxu0
      %924 = vmatprep.mubr.f32.mxu0 0.0
      %925 = vmatmul.mubr.f32.gmra.mrb[0].mxu0 %v803
      %v926 = vpop.f32.mrb[0].mxu0
      %v927 = vadd.f32 %v784, %v926
      %v928 = vpop.f32.mrb[0].mxu0
      %929 = vmatprep.mubr.f32.mxu0 0.0
      %930 = vmatmul.mubr.f32.gmra.mrb[0].mxu0 %v806
      %v931 = vpop.f32.mrb[0].mxu0
      %v932 = vadd.f32 %v784, %v931
      %v933 = vpop.f32.mrb[0].mxu0
      %934 = vmatprep.mubr.f32.mxu0 0.0
      %935 = vmatmul.mubr.f32.gmra.mrb[0].mxu0 %v809
      %v936 = vpop.f32.mrb[0].mxu0
      %v937 = vadd.f32 %v784, %v936
      %v938 = vpop.f32.mrb[0].mxu0
      %939 = vmatprep.mubr.f32.mxu0 0.0
      %940 = vmatmul.mubr.f32.gmra.mrb[0].mxu0 %v812
      %v941 = vpop.f32.mrb[0].mxu0
      %v942 = vadd.f32 %v784, %v941
      %v943 = vpop.f32.mrb[0].mxu0
      %944 = vmatprep.mubr.f32.mxu0 0.0
      %945 = vmatmul.mubr.f32.gmra.mrb[0].mxu0 %v815
      %v946 = vpop.f32.mrb[0].mxu0
      %v947 = vadd.f32 %v784, %v946
      %v948 = vpop.f32.mrb[0].mxu0
      %949 = vmatprep.mubr.f32.mxu0 0.0
      %950 = vmatmul.mubr.f32.gmra.mrb[0].mxu0 %v818
      %v951 = vpop.f32.mrb[0].mxu0
      %v952 = vadd.f32 %v784, %v951
      %v953 = vpop.f32.mrb[0].mxu0
      %954 = vmatprep.mubr.f32.mxu0 0.0
      %955 = vmatmul.mubr.f32.gmra.mrb[0].mxu0 %v821
      %v956 = vpop.f32.mrb[0].mxu0
      %v957 = vadd.f32 %v784, %v956
      %v958 = vpop.f32.mrb[0].mxu0
      %959 = vmatprep.mubr.f32.mxu0 0.0
      %960 = vmatmul.mubr.f32.gmra.mrb[0].mxu0 %v824
      %v961 = vpop.f32.mrb[0].mxu0
      %v962 = vadd.f32 %v784, %v961
      %v963 = vpop.f32.mrb[0].mxu0
      %964 = vmatprep.mubr.f32.mxu0 0.0
      %965 = vmatmul.mubr.f32.gmra.mrb[0].mxu0 %v827
      %v966 = vpop.f32.mrb[0].mxu0
      %v967 = vadd.f32 %v784, %v966
      %v968 = vpop.f32.mrb[0].mxu0
      %969 = vmatprep.mubr.f32.mxu0 0.0
      %970 = vmatmul.mubr.f32.gmra.mrb[0].mxu0 %v830
      %v971 = vpop.f32.mrb[0].mxu0
      %v972 = vadd.f32 %v784, %v971
      %v973 = vpop.f32.mrb[0].mxu0
      %974 = vmatprep.mubr.f32.mxu0 0.0
      %975 = vmatmul.mubr.f32.gmra.mrb[0].mxu0 %v833
      %v976 = vpop.f32.mrb[0].mxu0
      %v977 = vadd.f32 %v784, %v976
      %v978 = vpop.f32.mrb[0].mxu0
      %979 = vdwg.mxu0
      %v980 = vmax.f32 %v902, 0.0
      %v981 = vmax.f32 %v907, 0.0
      %v982 = vmax.f32 %v912, 0.0
      %v983 = vmax.f32 %v917, 0.0
      %v984 = vmax.f32 %v922, 0.0
      %v985 = vmax.f32 %v927, 0.0
      %v986 = vmax.f32 %v932, 0.0
      %v987 = vmax.f32 %v937, 0.0
      %v988 = vmax.f32 %v942, 0.0
      %v989 = vmax.f32 %v947, 0.0
      %v990 = vmax.f32 %v952, 0.0
      %v991 = vmax.f32 %v957, 0.0
      %v992 = vmax.f32 %v962, 0.0
      %v993 = vmax.f32 %v967, 0.0
      %v994 = vmax.f32 %v972, 0.0
      %v995 = vmax.f32 %v977, 0.0
      %v996 = vld [vmem:[%s6] sm:$0xff]
      %v997 = vld [vmem:[%s6 + $0x8] sm:$0xff]
      %v998 = vld [vmem:[%s6 + $0x10] sm:$0xff]
      %v999 = vld [vmem:[%s6 + $0x18] sm:$0xff]
      %v1000 = vld [vmem:[%s6 + $0x20] sm:$0xff]
      %v1001 = vld [vmem:[%s6 + $0x28] sm:$0xff]
      %v1002 = vld [vmem:[%s6 + $0x30] sm:$0xff]
      %v1003 = vld [vmem:[%s6 + $0x38] sm:$0xff]
      %v1004 = vld [vmem:[%s7] sm:$0x1]
      %v1006 = vlaneseq
      %v1007 = vshrl.u32 %v1006, 7
      %v1008 = vsub.s32 0, %v1007
      %v1009 = vrot.slane %v1004, %v1008
      %v1012 = vsel %vm786, %v980, 0
      %v1015 = vsel %vm786, %v981, 0
      %v1018 = vsel %vm786, %v982, 0
      %v1021 = vsel %vm786, %v983, 0
      %v1024 = vsel %vm786, %v984, 0
      %v1027 = vsel %vm786, %v985, 0
      %v1030 = vsel %vm786, %v986, 0
      %v1033 = vsel %vm786, %v987, 0
      %v1036 = vsel %vm786, %v988, 0
      %v1039 = vsel %vm786, %v989, 0
      %v1042 = vsel %vm786, %v990, 0
      %v1045 = vsel %vm786, %v991, 0
      %v1048 = vsel %vm786, %v992, 0
      %v1051 = vsel %vm786, %v993, 0
      %v1054 = vsel %vm786, %v994, 0
      %v1057 = vsel %vm786, %v995, 0
      %1059 = vmatprep.subr.mxu0 0.0
      %1060 = vmatpush1.msra.mxu0 %v996
      %1061 = vmatprep.subr.mxu0 0.0
      %1062 = vmatpush1.msra.mxu0 %v997
      %1063 = vmatprep.subr.mxu0 0.0
      %1064 = vmatpush1.msra.mxu0 %v998
      %1065 = vmatprep.subr.mxu0 0.0
      %1066 = vmatpush1.msra.mxu0 %v999
      %1067 = vmatprep.subr.mxu0 0.0
      %1068 = vmatpush1.msra.mxu0 %v1000
      %1069 = vmatprep.subr.mxu0 0.0
      %1070 = vmatpush1.msra.mxu0 %v1001
      %1071 = vmatprep.subr.mxu0 0.0
      %1072 = vmatpush1.msra.mxu0 %v1002
      %1073 = vmatprep.subr.mxu0 0.0
      %1074 = vmatpush1.msra.mxu0 %v1003
      %1075 = vmatprep.subr.mxu0 0.0
      %1076 = vmatpush1.msra.mxu0 0.0
      %1077 = vmatprep.subr.mxu0 0.0
      %1078 = vmatpush1.msra.mxu0 0.0
      %1079 = vmatprep.subr.mxu0 0.0
      %1080 = vmatpush1.msra.mxu0 0.0
      %1081 = vmatprep.subr.mxu0 0.0
      %1082 = vmatpush1.msra.mxu0 0.0
      %1083 = vmatprep.subr.mxu0 0.0
      %1084 = vmatpush1.msra.mxu0 0.0
      %1085 = vmatprep.subr.mxu0 0.0
      %1086 = vmatpush1.msra.mxu0 0.0
      %1087 = vmatprep.subr.mxu0 0.0
      %1088 = vmatpush1.msra.mxu0 0.0
      %1089 = vmatprep.subr.mxu0 0.0
      %1090 = vmatpush1.msra.mxu0 0.0
      %1091 = vmatprep.subr.mxu0 0.0
      %1092 = vmatpush1.msra.mxu0 0.0
      %1093 = vmatprep.subr.mxu0 0.0
      %1094 = vmatpush1.msra.mxu0 0.0
      %1095 = vmatprep.subr.mxu0 0.0
      %1096 = vmatpush1.msra.mxu0 0.0
      %1097 = vmatprep.subr.mxu0 0.0
      %1098 = vmatpush1.msra.mxu0 0.0
      %1099 = vmatprep.subr.mxu0 0.0
      %1100 = vmatpush1.msra.mxu0 0.0
      %1101 = vmatprep.subr.mxu0 0.0
      %1102 = vmatpush1.msra.mxu0 0.0
      %1103 = vmatprep.subr.mxu0 0.0
      %1104 = vmatpush1.msra.mxu0 0.0
      %1105 = vmatprep.subr.mxu0 0.0
      %1106 = vmatpush1.msra.mxu0 0.0
      %1107 = vmatprep.subr.mxu0 0.0
      %1108 = vmatpush1.msra.mxu0 0.0
      %1109 = vmatprep.subr.mxu0 0.0
      %1110 = vmatpush1.msra.mxu0 0.0
      %1111 = vmatprep.subr.mxu0 0.0
      %1112 = vmatpush1.msra.mxu0 0.0
      %1113 = vmatprep.subr.mxu0 0.0
      %1114 = vmatpush1.msra.mxu0 0.0
      %1115 = vmatprep.subr.mxu0 0.0
      %1116 = vmatpush1.msra.mxu0 0.0
      %1117 = vmatprep.subr.mxu0 0.0
      %1118 = vmatpush1.msra.mxu0 0.0
      %1119 = vmatprep.subr.mxu0 0.0
      %1120 = vmatpush1.msra.mxu0 0.0
      %1121 = vmatprep.subr.mxu0 0.0
      %1122 = vmatpush1.msra.mxu0 0.0
      %1123 = vmatprep.mubr.f32.mxu0 0.0
      %1124 = vmatmul.mubr.f32.gmra.mrb[0].mxu0 %v1012
      %v1125 = vpop.f32.mrb[0].mxu0
      %v1126 = vadd.f32 %v1009, %v1125
      %v1127 = vpop.f32.mrb[0].mxu0
      %1128 = vmatprep.mubr.f32.mxu0 0.0
      %1129 = vmatmul.mubr.f32.gmra.mrb[0].mxu0 %v1015
      %v1130 = vpop.f32.mrb[0].mxu0
      %v1131 = vadd.f32 %v1009, %v1130
      %v1132 = vpop.f32.mrb[0].mxu0
      %1133 = vmatprep.mubr.f32.mxu0 0.0
      %1134 = vmatmul.mubr.f32.gmra.mrb[0].mxu0 %v1018
      %v1135 = vpop.f32.mrb[0].mxu0
      %v1136 = vadd.f32 %v1009, %v1135
      %v1137 = vpop.f32.mrb[0].mxu0
      %1138 = vmatprep.mubr.f32.mxu0 0.0
      %1139 = vmatmul.mubr.f32.gmra.mrb[0].mxu0 %v1021
      %v1140 = vpop.f32.mrb[0].mxu0
      %v1141 = vadd.f32 %v1009, %v1140
      %v1142 = vpop.f32.mrb[0].mxu0
      %1143 = vmatprep.mubr.f32.mxu0 0.0
      %1144 = vmatmul.mubr.f32.gmra.mrb[0].mxu0 %v1024
      %v1145 = vpop.f32.mrb[0].mxu0
      %v1146 = vadd.f32 %v1009, %v1145
      %v1147 = vpop.f32.mrb[0].mxu0
      %1148 = vmatprep.mubr.f32.mxu0 0.0
      %1149 = vmatmul.mubr.f32.gmra.mrb[0].mxu0 %v1027
      %v1150 = vpop.f32.mrb[0].mxu0
      %v1151 = vadd.f32 %v1009, %v1150
      %v1152 = vpop.f32.mrb[0].mxu0
      %1153 = vmatprep.mubr.f32.mxu0 0.0
      %1154 = vmatmul.mubr.f32.gmra.mrb[0].mxu0 %v1030
      %v1155 = vpop.f32.mrb[0].mxu0
      %v1156 = vadd.f32 %v1009, %v1155
      %v1157 = vpop.f32.mrb[0].mxu0
      %1158 = vmatprep.mubr.f32.mxu0 0.0
      %1159 = vmatmul.mubr.f32.gmra.mrb[0].mxu0 %v1033
      %v1160 = vpop.f32.mrb[0].mxu0
      %v1161 = vadd.f32 %v1009, %v1160
      %v1162 = vpop.f32.mrb[0].mxu0
      %1163 = vmatprep.mubr.f32.mxu0 0.0
      %1164 = vmatmul.mubr.f32.gmra.mrb[0].mxu0 %v1036
      %v1165 = vpop.f32.mrb[0].mxu0
      %v1166 = vadd.f32 %v1009, %v1165
      %v1167 = vpop.f32.mrb[0].mxu0
      %1168 = vmatprep.mubr.f32.mxu0 0.0
      %1169 = vmatmul.mubr.f32.gmra.mrb[0].mxu0 %v1039
      %v1170 = vpop.f32.mrb[0].mxu0
      %v1171 = vadd.f32 %v1009, %v1170
      %v1172 = vpop.f32.mrb[0].mxu0
      %1173 = vmatprep.mubr.f32.mxu0 0.0
      %1174 = vmatmul.mubr.f32.gmra.mrb[0].mxu0 %v1042
      %v1175 = vpop.f32.mrb[0].mxu0
      %v1176 = vadd.f32 %v1009, %v1175
      %v1177 = vpop.f32.mrb[0].mxu0
      %1178 = vmatprep.mubr.f32.mxu0 0.0
      %1179 = vmatmul.mubr.f32.gmra.mrb[0].mxu0 %v1045
      %v1180 = vpop.f32.mrb[0].mxu0
      %v1181 = vadd.f32 %v1009, %v1180
      %v1182 = vpop.f32.mrb[0].mxu0
      %1183 = vmatprep.mubr.f32.mxu0 0.0
      %1184 = vmatmul.mubr.f32.gmra.mrb[0].mxu0 %v1048
      %v1185 = vpop.f32.mrb[0].mxu0
      %v1186 = vadd.f32 %v1009, %v1185
      %v1187 = vpop.f32.mrb[0].mxu0
      %1188 = vmatprep.mubr.f32.mxu0 0.0
      %1189 = vmatmul.mubr.f32.gmra.mrb[0].mxu0 %v1051
      %v1190 = vpop.f32.mrb[0].mxu0
      %v1191 = vadd.f32 %v1009, %v1190
      %v1192 = vpop.f32.mrb[0].mxu0
      %1193 = vmatprep.mubr.f32.mxu0 0.0
      %1194 = vmatmul.mubr.f32.gmra.mrb[0].mxu0 %v1054
      %v1195 = vpop.f32.mrb[0].mxu0
      %v1196 = vadd.f32 %v1009, %v1195
      %v1197 = vpop.f32.mrb[0].mxu0
      %1198 = vmatprep.mubr.f32.mxu0 0.0
      %1199 = vmatmul.mubr.f32.gmra.mrb[0].mxu0 %v1057
      %v1200 = vpop.f32.mrb[0].mxu0
      %v1201 = vadd.f32 %v1009, %v1200
      %v1202 = vpop.f32.mrb[0].mxu0
      %1203 = vdwg.mxu0
      %v1204 = vmul.f32 %v1126, 0.5
      %v1205 = vmul.f32 %v1131, 0.5
      %v1206 = vmul.f32 %v1136, 0.5
      %v1207 = vmul.f32 %v1141, 0.5
      %v1208 = vmul.f32 %v1146, 0.5
      %v1209 = vmul.f32 %v1151, 0.5
      %v1210 = vmul.f32 %v1156, 0.5
      %v1211 = vmul.f32 %v1161, 0.5
      %v1212 = vmul.f32 %v1166, 0.5
      %v1213 = vmul.f32 %v1171, 0.5
      %v1214 = vmul.f32 %v1176, 0.5
      %v1215 = vmul.f32 %v1181, 0.5
      %v1216 = vmul.f32 %v1186, 0.5
      %v1217 = vmul.f32 %v1191, 0.5
      %v1218 = vmul.f32 %v1196, 0.5
      %v1219 = vmul.f32 %v1201, 0.5
      %v1220 = vmul.f32 %v1204, 1.442695
      %v1221 = vpow.pop %v1220
      %v1222 = vmul.f32 %v1205, 1.442695
      %v1223 = vpow.pop %v1222
      %v1224 = vmul.f32 %v1206, 1.442695
      %v1225 = vpow.pop %v1224
      %v1226 = vmul.f32 %v1207, 1.442695
      %v1227 = vpow.pop %v1226
      %v1228 = vmul.f32 %v1208, 1.442695
      %v1229 = vpow.pop %v1228
      %v1230 = vmul.f32 %v1209, 1.442695
      %v1231 = vpow.pop %v1230
      %v1232 = vmul.f32 %v1210, 1.442695
      %v1233 = vpow.pop %v1232
      %v1234 = vmul.f32 %v1211, 1.442695
      %v1235 = vpow.pop %v1234
      %v1236 = vmul.f32 %v1212, 1.442695
      %v1237 = vpow.pop %v1236
      %v1238 = vmul.f32 %v1213, 1.442695
      %v1239 = vpow.pop %v1238
      %v1240 = vmul.f32 %v1214, 1.442695
      %v1241 = vpow.pop %v1240
      %v1242 = vmul.f32 %v1215, 1.442695
      %v1243 = vpow.pop %v1242
      %v1244 = vmul.f32 %v1216, 1.442695
      %v1245 = vpow.pop %v1244
      %v1246 = vmul.f32 %v1217, 1.442695
      %v1247 = vpow.pop %v1246
      %v1248 = vmul.f32 %v1218, 1.442695
      %v1249 = vpow.pop %v1248
      %v1250 = vmul.f32 %v1219, 1.442695
      %v1251 = vpow.pop %v1250
      %v1252 = vld [vmem:[%s520] sm:$0xff]
      %v1253 = vld [vmem:[%s520 + $0x8] sm:$0xff]
      %v1254 = vld [vmem:[%s520 + $0x10] sm:$0xff]
      %v1255 = vld [vmem:[%s520 + $0x18] sm:$0xff]
      %v1256 = vld [vmem:[%s520 + $0x20] sm:$0xff]
      %v1257 = vld [vmem:[%s520 + $0x28] sm:$0xff]
      %v1258 = vld [vmem:[%s520 + $0x30] sm:$0xff]
      %v1259 = vld [vmem:[%s520 + $0x38] sm:$0xff]
      %v1260 = vld [vmem:[%s520 + $0x40] sm:$0xff]
      %v1261 = vld [vmem:[%s520 + $0x48] sm:$0xff]
      %v1262 = vld [vmem:[%s520 + $0x50] sm:$0xff]
      %v1263 = vld [vmem:[%s520 + $0x58] sm:$0xff]
      %v1264 = vld [vmem:[%s520 + $0x60] sm:$0xff]
      %v1265 = vld [vmem:[%s520 + $0x68] sm:$0xff]
      %v1266 = vld [vmem:[%s520 + $0x70] sm:$0xff]
      %v1267 = vld [vmem:[%s520 + $0x78] sm:$0xff]
      %1284 = vrot.lane.b32.xlu0 %v1221, 126
      %v1285 = vpop.permute.xlu0 %1284
      %1286 = vrot.lane.b32.xlu0 %v1223, 126
      %v1287 = vpop.permute.xlu0 %1286
      %1288 = vrot.lane.b32.xlu0 %v1225, 126
      %v1289 = vpop.permute.xlu0 %1288
      %1290 = vrot.lane.b32.xlu0 %v1227, 126
      %v1291 = vpop.permute.xlu0 %1290
      %1292 = vrot.lane.b32.xlu0 %v1229, 126
      %v1293 = vpop.permute.xlu0 %1292
      %1294 = vrot.lane.b32.xlu0 %v1231, 126
      %v1295 = vpop.permute.xlu0 %1294
      %1296 = vrot.lane.b32.xlu0 %v1233, 126
      %v1297 = vpop.permute.xlu0 %1296
      %1298 = vrot.lane.b32.xlu0 %v1235, 126
      %v1299 = vpop.permute.xlu0 %1298
      %1300 = vrot.lane.b32.xlu0 %v1237, 126
      %v1301 = vpop.permute.xlu0 %1300
      %1302 = vrot.lane.b32.xlu0 %v1239, 126
      %v1303 = vpop.permute.xlu0 %1302
      %1304 = vrot.lane.b32.xlu0 %v1241, 126
      %v1305 = vpop.permute.xlu0 %1304
      %1306 = vrot.lane.b32.xlu0 %v1243, 126
      %v1307 = vpop.permute.xlu0 %1306
      %1308 = vrot.lane.b32.xlu0 %v1245, 126
      %v1309 = vpop.permute.xlu0 %1308
      %1310 = vrot.lane.b32.xlu0 %v1247, 126
      %v1311 = vpop.permute.xlu0 %1310
      %1312 = vrot.lane.b32.xlu0 %v1249, 126
      %v1313 = vpop.permute.xlu0 %1312
      %1314 = vrot.lane.b32.xlu0 %v1251, 126
      %v1315 = vpop.permute.xlu0 %1314
      %v1332 = vmul.f32 %v1252, %v1285
      %v1333 = vmul.f32 %v1253, %v1287
      %v1334 = vmul.f32 %v1254, %v1289
      %v1335 = vmul.f32 %v1255, %v1291
      %v1336 = vmul.f32 %v1256, %v1293
      %v1337 = vmul.f32 %v1257, %v1295
      %v1338 = vmul.f32 %v1258, %v1297
      %v1339 = vmul.f32 %v1259, %v1299
      %v1340 = vmul.f32 %v1260, %v1301
      %v1341 = vmul.f32 %v1261, %v1303
      %v1342 = vmul.f32 %v1262, %v1305
      %v1343 = vmul.f32 %v1263, %v1307
      %v1344 = vmul.f32 %v1264, %v1309
      %v1345 = vmul.f32 %v1265, %v1311
      %v1346 = vmul.f32 %v1266, %v1313
      %v1347 = vmul.f32 %v1267, %v1315
      %v1348 = vadd.f32 %v1126, %v1332
      %v1349 = vadd.f32 %v1131, %v1333
      %v1350 = vadd.f32 %v1136, %v1334
      %v1351 = vadd.f32 %v1141, %v1335
      %v1352 = vadd.f32 %v1146, %v1336
      %v1353 = vadd.f32 %v1151, %v1337
      %v1354 = vadd.f32 %v1156, %v1338
      %v1355 = vadd.f32 %v1161, %v1339
      %v1356 = vadd.f32 %v1166, %v1340
      %v1357 = vadd.f32 %v1171, %v1341
      %v1358 = vadd.f32 %v1176, %v1342
      %v1359 = vadd.f32 %v1181, %v1343
      %v1360 = vadd.f32 %v1186, %v1344
      %v1361 = vadd.f32 %v1191, %v1345
      %v1362 = vadd.f32 %v1196, %v1346
      %v1363 = vadd.f32 %v1201, %v1347
      %v1364 = vld [vmem:[%s8] sm:$0x3]
      %v1365 = vld [vmem:[%s9] sm:$0x1]
      %v1367 = vlaneseq
      %v1368 = vshrl.u32 %v1367, 7
      %v1369 = vsub.s32 0, %v1368
      %v1370 = vrot.slane %v1365, %v1369
      %vm1372 = vcmask 15360
      %v1374 = vsel %vm1372, %v1348, 0
      %v1377 = vsel %vm1372, %v1349, 0
      %v1380 = vsel %vm1372, %v1350, 0
      %v1383 = vsel %vm1372, %v1351, 0
      %v1386 = vsel %vm1372, %v1352, 0
      %v1389 = vsel %vm1372, %v1353, 0
      %v1392 = vsel %vm1372, %v1354, 0
      %v1395 = vsel %vm1372, %v1355, 0
      %v1398 = vsel %vm1372, %v1356, 0
      %v1401 = vsel %vm1372, %v1357, 0
      %v1404 = vsel %vm1372, %v1358, 0
      %v1407 = vsel %vm1372, %v1359, 0
      %v1410 = vsel %vm1372, %v1360, 0
      %v1413 = vsel %vm1372, %v1361, 0
      %v1416 = vsel %vm1372, %v1362, 0
      %v1419 = vsel %vm1372, %v1363, 0
      %vm1421 = vcmask 1041408
      %v1423 = vsel %vm1421, %v1364, 0
      %1425 = vmatprep.subr.mxu0 0.0
      %1426 = vmatpush1.msra.mxu0 %v1423
      %1427 = vmatprep.subr.mxu0 0.0
      %1428 = vmatpush1.msra.mxu0 0.0
      %1429 = vmatprep.subr.mxu0 0.0
      %1430 = vmatpush1.msra.mxu0 0.0
      %1431 = vmatprep.subr.mxu0 0.0
      %1432 = vmatpush1.msra.mxu0 0.0
      %1433 = vmatprep.subr.mxu0 0.0
      %1434 = vmatpush1.msra.mxu0 0.0
      %1435 = vmatprep.subr.mxu0 0.0
      %1436 = vmatpush1.msra.mxu0 0.0
      %1437 = vmatprep.subr.mxu0 0.0
      %1438 = vmatpush1.msra.mxu0 0.0
      %1439 = vmatprep.subr.mxu0 0.0
      %1440 = vmatpush1.msra.mxu0 0.0
      %1441 = vmatprep.subr.mxu0 0.0
      %1442 = vmatpush1.msra.mxu0 0.0
      %1443 = vmatprep.subr.mxu0 0.0
      %1444 = vmatpush1.msra.mxu0 0.0
      %1445 = vmatprep.subr.mxu0 0.0
      %1446 = vmatpush1.msra.mxu0 0.0
      %1447 = vmatprep.subr.mxu0 0.0
      %1448 = vmatpush1.msra.mxu0 0.0
      %1449 = vmatprep.subr.mxu0 0.0
      %1450 = vmatpush1.msra.mxu0 0.0
      %1451 = vmatprep.subr.mxu0 0.0
      %1452 = vmatpush1.msra.mxu0 0.0
      %1453 = vmatprep.subr.mxu0 0.0
      %1454 = vmatpush1.msra.mxu0 0.0
      %1455 = vmatprep.subr.mxu0 0.0
      %1456 = vmatpush1.msra.mxu0 0.0
      %1457 = vmatprep.subr.mxu0 0.0
      %1458 = vmatpush1.msra.mxu0 0.0
      %1459 = vmatprep.subr.mxu0 0.0
      %1460 = vmatpush1.msra.mxu0 0.0
      %1461 = vmatprep.subr.mxu0 0.0
      %1462 = vmatpush1.msra.mxu0 0.0
      %1463 = vmatprep.subr.mxu0 0.0
      %1464 = vmatpush1.msra.mxu0 0.0
      %1465 = vmatprep.subr.mxu0 0.0
      %1466 = vmatpush1.msra.mxu0 0.0
      %1467 = vmatprep.subr.mxu0 0.0
      %1468 = vmatpush1.msra.mxu0 0.0
      %1469 = vmatprep.subr.mxu0 0.0
      %1470 = vmatpush1.msra.mxu0 0.0
      %1471 = vmatprep.subr.mxu0 0.0
      %1472 = vmatpush1.msra.mxu0 0.0
      %1473 = vmatprep.subr.mxu0 0.0
      %1474 = vmatpush1.msra.mxu0 0.0
      %1475 = vmatprep.subr.mxu0 0.0
      %1476 = vmatpush1.msra.mxu0 0.0
      %1477 = vmatprep.subr.mxu0 0.0
      %1478 = vmatpush1.msra.mxu0 0.0
      %1479 = vmatprep.subr.mxu0 0.0
      %1480 = vmatpush1.msra.mxu0 0.0
      %1481 = vmatprep.subr.mxu0 0.0
      %1482 = vmatpush1.msra.mxu0 0.0
      %1483 = vmatprep.subr.mxu0 0.0
      %1484 = vmatpush1.msra.mxu0 0.0
      %1485 = vmatprep.subr.mxu0 0.0
      %1486 = vmatpush1.msra.mxu0 0.0
      %1487 = vmatprep.subr.mxu0 0.0
      %1488 = vmatpush1.msra.mxu0 0.0
      %1489 = vmatprep.mubr.f32.mxu0 0.0
      %1490 = vmatmul.mubr.f32.gmra.mrb[0].mxu0 %v1374
      %v1491 = vpop.f32.mrb[0].mxu0
      %v1492 = vadd.f32 %v1370, %v1491
      %v1493 = vpop.f32.mrb[0].mxu0
      %1494 = vmatprep.mubr.f32.mxu0 0.0
      %1495 = vmatmul.mubr.f32.gmra.mrb[0].mxu0 %v1377
      %v1496 = vpop.f32.mrb[0].mxu0
      %v1497 = vadd.f32 %v1370, %v1496
      %v1498 = vpop.f32.mrb[0].mxu0
      %1499 = vmatprep.mubr.f32.mxu0 0.0
      %1500 = vmatmul.mubr.f32.gmra.mrb[0].mxu0 %v1380
      %v1501 = vpop.f32.mrb[0].mxu0
      %v1502 = vadd.f32 %v1370, %v1501
      %v1503 = vpop.f32.mrb[0].mxu0
      %1504 = vmatprep.mubr.f32.mxu0 0.0
      %1505 = vmatmul.mubr.f32.gmra.mrb[0].mxu0 %v1383
      %v1506 = vpop.f32.mrb[0].mxu0
      %v1507 = vadd.f32 %v1370, %v1506
      %v1508 = vpop.f32.mrb[0].mxu0
      %1509 = vmatprep.mubr.f32.mxu0 0.0
      %1510 = vmatmul.mubr.f32.gmra.mrb[0].mxu0 %v1386
      %v1511 = vpop.f32.mrb[0].mxu0
      %v1512 = vadd.f32 %v1370, %v1511
      %v1513 = vpop.f32.mrb[0].mxu0
      %1514 = vmatprep.mubr.f32.mxu0 0.0
      %1515 = vmatmul.mubr.f32.gmra.mrb[0].mxu0 %v1389
      %v1516 = vpop.f32.mrb[0].mxu0
      %v1517 = vadd.f32 %v1370, %v1516
      %v1518 = vpop.f32.mrb[0].mxu0
      %1519 = vmatprep.mubr.f32.mxu0 0.0
      %1520 = vmatmul.mubr.f32.gmra.mrb[0].mxu0 %v1392
      %v1521 = vpop.f32.mrb[0].mxu0
      %v1522 = vadd.f32 %v1370, %v1521
      %v1523 = vpop.f32.mrb[0].mxu0
      %1524 = vmatprep.mubr.f32.mxu0 0.0
      %1525 = vmatmul.mubr.f32.gmra.mrb[0].mxu0 %v1395
      %v1526 = vpop.f32.mrb[0].mxu0
      %v1527 = vadd.f32 %v1370, %v1526
      %v1528 = vpop.f32.mrb[0].mxu0
      %1529 = vmatprep.mubr.f32.mxu0 0.0
      %1530 = vmatmul.mubr.f32.gmra.mrb[0].mxu0 %v1398
      %v1531 = vpop.f32.mrb[0].mxu0
      %v1532 = vadd.f32 %v1370, %v1531
      %v1533 = vpop.f32.mrb[0].mxu0
      %1534 = vmatprep.mubr.f32.mxu0 0.0
      %1535 = vmatmul.mubr.f32.gmra.mrb[0].mxu0 %v1401
      %v1536 = vpop.f32.mrb[0].mxu0
      %v1537 = vadd.f32 %v1370, %v1536
      %v1538 = vpop.f32.mrb[0].mxu0
      %1539 = vmatprep.mubr.f32.mxu0 0.0
      %1540 = vmatmul.mubr.f32.gmra.mrb[0].mxu0 %v1404
      %v1541 = vpop.f32.mrb[0].mxu0
      %v1542 = vadd.f32 %v1370, %v1541
      %v1543 = vpop.f32.mrb[0].mxu0
      %1544 = vmatprep.mubr.f32.mxu0 0.0
      %1545 = vmatmul.mubr.f32.gmra.mrb[0].mxu0 %v1407
      %v1546 = vpop.f32.mrb[0].mxu0
      %v1547 = vadd.f32 %v1370, %v1546
      %v1548 = vpop.f32.mrb[0].mxu0
      %1549 = vmatprep.mubr.f32.mxu0 0.0
      %1550 = vmatmul.mubr.f32.gmra.mrb[0].mxu0 %v1410
      %v1551 = vpop.f32.mrb[0].mxu0
      %v1552 = vadd.f32 %v1370, %v1551
      %v1553 = vpop.f32.mrb[0].mxu0
      %1554 = vmatprep.mubr.f32.mxu0 0.0
      %1555 = vmatmul.mubr.f32.gmra.mrb[0].mxu0 %v1413
      %v1556 = vpop.f32.mrb[0].mxu0
      %v1557 = vadd.f32 %v1370, %v1556
      %v1558 = vpop.f32.mrb[0].mxu0
      %1559 = vmatprep.mubr.f32.mxu0 0.0
      %1560 = vmatmul.mubr.f32.gmra.mrb[0].mxu0 %v1416
      %v1561 = vpop.f32.mrb[0].mxu0
      %v1562 = vadd.f32 %v1370, %v1561
      %v1563 = vpop.f32.mrb[0].mxu0
      %1564 = vmatprep.mubr.f32.mxu0 0.0
      %1565 = vmatmul.mubr.f32.gmra.mrb[0].mxu0 %v1419
      %v1566 = vpop.f32.mrb[0].mxu0
      %v1567 = vadd.f32 %v1370, %v1566
      %v1568 = vpop.f32.mrb[0].mxu0
      %1569 = vdwg.mxu0
      %v1570 = vmax.f32 %v1492, 0.0
      %v1571 = vmax.f32 %v1497, 0.0
      %v1572 = vmax.f32 %v1502, 0.0
      %v1573 = vmax.f32 %v1507, 0.0
      %v1574 = vmax.f32 %v1512, 0.0
      %v1575 = vmax.f32 %v1517, 0.0
      %v1576 = vmax.f32 %v1522, 0.0
      %v1577 = vmax.f32 %v1527, 0.0
      %v1578 = vmax.f32 %v1532, 0.0
      %v1579 = vmax.f32 %v1537, 0.0
      %v1580 = vmax.f32 %v1542, 0.0
      %v1581 = vmax.f32 %v1547, 0.0
      %v1582 = vmax.f32 %v1552, 0.0
      %v1583 = vmax.f32 %v1557, 0.0
      %v1584 = vmax.f32 %v1562, 0.0
      %v1585 = vmax.f32 %v1567, 0.0
      %v1586 = vld [vmem:[%s10] sm:$0xff]
      %v1587 = vld [vmem:[%s10 + $0x8] sm:$0xff]
      %v1588 = vld [vmem:[%s10 + $0x10] sm:$0xff]
      %v1589 = vld [vmem:[%s10 + $0x18] sm:$0xff]
      %v1590 = vld [vmem:[%s10 + $0x20] sm:$0xff]
      %v1591 = vld [vmem:[%s10 + $0x28] sm:$0xff]
      %v1592 = vld [vmem:[%s10 + $0x30] sm:$0xff]
      %v1593 = vld [vmem:[%s10 + $0x38] sm:$0xff]
      %v1594 = vld [vmem:[%s11] sm:$0x1]
      %v1596 = vlaneseq
      %v1597 = vshrl.u32 %v1596, 7
      %v1598 = vsub.s32 0, %v1597
      %v1599 = vrot.slane %v1594, %v1598
      %v1602 = vsel %vm786, %v1570, 0
      %v1605 = vsel %vm786, %v1571, 0
      %v1608 = vsel %vm786, %v1572, 0
      %v1611 = vsel %vm786, %v1573, 0
      %v1614 = vsel %vm786, %v1574, 0
      %v1617 = vsel %vm786, %v1575, 0
      %v1620 = vsel %vm786, %v1576, 0
      %v1623 = vsel %vm786, %v1577, 0
      %v1626 = vsel %vm786, %v1578, 0
      %v1629 = vsel %vm786, %v1579, 0
      %v1632 = vsel %vm786, %v1580, 0
      %v1635 = vsel %vm786, %v1581, 0
      %v1638 = vsel %vm786, %v1582, 0
      %v1641 = vsel %vm786, %v1583, 0
      %v1644 = vsel %vm786, %v1584, 0
      %v1647 = vsel %vm786, %v1585, 0
      %1649 = vmatprep.subr.mxu0 0.0
      %1650 = vmatpush1.msra.mxu0 %v1586
      %1651 = vmatprep.subr.mxu0 0.0
      %1652 = vmatpush1.msra.mxu0 %v1587
      %1653 = vmatprep.subr.mxu0 0.0
      %1654 = vmatpush1.msra.mxu0 %v1588
      %1655 = vmatprep.subr.mxu0 0.0
      %1656 = vmatpush1.msra.mxu0 %v1589
      %1657 = vmatprep.subr.mxu0 0.0
      %1658 = vmatpush1.msra.mxu0 %v1590
      %1659 = vmatprep.subr.mxu0 0.0
      %1660 = vmatpush1.msra.mxu0 %v1591
      %1661 = vmatprep.subr.mxu0 0.0
      %1662 = vmatpush1.msra.mxu0 %v1592
      %1663 = vmatprep.subr.mxu0 0.0
      %1664 = vmatpush1.msra.mxu0 %v1593
      %1665 = vmatprep.subr.mxu0 0.0
      %1666 = vmatpush1.msra.mxu0 0.0
      %1667 = vmatprep.subr.mxu0 0.0
      %1668 = vmatpush1.msra.mxu0 0.0
      %1669 = vmatprep.subr.mxu0 0.0
      %1670 = vmatpush1.msra.mxu0 0.0
      %1671 = vmatprep.subr.mxu0 0.0
      %1672 = vmatpush1.msra.mxu0 0.0
      %1673 = vmatprep.subr.mxu0 0.0
      %1674 = vmatpush1.msra.mxu0 0.0
      %1675 = vmatprep.subr.mxu0 0.0
      %1676 = vmatpush1.msra.mxu0 0.0
      %1677 = vmatprep.subr.mxu0 0.0
      %1678 = vmatpush1.msra.mxu0 0.0
      %1679 = vmatprep.subr.mxu0 0.0
      %1680 = vmatpush1.msra.mxu0 0.0
      %1681 = vmatprep.subr.mxu0 0.0
      %1682 = vmatpush1.msra.mxu0 0.0
      %1683 = vmatprep.subr.mxu0 0.0
      %1684 = vmatpush1.msra.mxu0 0.0
      %1685 = vmatprep.subr.mxu0 0.0
      %1686 = vmatpush1.msra.mxu0 0.0
      %1687 = vmatprep.subr.mxu0 0.0
      %1688 = vmatpush1.msra.mxu0 0.0
      %1689 = vmatprep.subr.mxu0 0.0
      %1690 = vmatpush1.msra.mxu0 0.0
      %1691 = vmatprep.subr.mxu0 0.0
      %1692 = vmatpush1.msra.mxu0 0.0
      %1693 = vmatprep.subr.mxu0 0.0
      %1694 = vmatpush1.msra.mxu0 0.0
      %1695 = vmatprep.subr.mxu0 0.0
      %1696 = vmatpush1.msra.mxu0 0.0
      %1697 = vmatprep.subr.mxu0 0.0
      %1698 = vmatpush1.msra.mxu0 0.0
      %1699 = vmatprep.subr.mxu0 0.0
      %1700 = vmatpush1.msra.mxu0 0.0
      %1701 = vmatprep.subr.mxu0 0.0
      %1702 = vmatpush1.msra.mxu0 0.0
      %1703 = vmatprep.subr.mxu0 0.0
      %1704 = vmatpush1.msra.mxu0 0.0
      %1705 = vmatprep.subr.mxu0 0.0
      %1706 = vmatpush1.msra.mxu0 0.0
      %1707 = vmatprep.subr.mxu0 0.0
      %1708 = vmatpush1.msra.mxu0 0.0
      %1709 = vmatprep.subr.mxu0 0.0
      %1710 = vmatpush1.msra.mxu0 0.0
      %1711 = vmatprep.subr.mxu0 0.0
      %1712 = vmatpush1.msra.mxu0 0.0
      %1713 = vmatprep.mubr.f32.mxu0 0.0
      %1714 = vmatmul.mubr.f32.gmra.mrb[0].mxu0 %v1602
      %v1715 = vpop.f32.mrb[0].mxu0
      %v1716 = vadd.f32 %v1599, %v1715
      %v1717 = vpop.f32.mrb[0].mxu0
      %1718 = vmatprep.mubr.f32.mxu0 0.0
      %1719 = vmatmul.mubr.f32.gmra.mrb[0].mxu0 %v1605
      %v1720 = vpop.f32.mrb[0].mxu0
      %v1721 = vadd.f32 %v1599, %v1720
      %v1722 = vpop.f32.mrb[0].mxu0
      %1723 = vmatprep.mubr.f32.mxu0 0.0
      %1724 = vmatmul.mubr.f32.gmra.mrb[0].mxu0 %v1608
      %v1725 = vpop.f32.mrb[0].mxu0
      %v1726 = vadd.f32 %v1599, %v1725
      %v1727 = vpop.f32.mrb[0].mxu0
      %1728 = vmatprep.mubr.f32.mxu0 0.0
      %1729 = vmatmul.mubr.f32.gmra.mrb[0].mxu0 %v1611
      %v1730 = vpop.f32.mrb[0].mxu0
      %v1731 = vadd.f32 %v1599, %v1730
      %v1732 = vpop.f32.mrb[0].mxu0
      %1733 = vmatprep.mubr.f32.mxu0 0.0
      %1734 = vmatmul.mubr.f32.gmra.mrb[0].mxu0 %v1614
      %v1735 = vpop.f32.mrb[0].mxu0
      %v1736 = vadd.f32 %v1599, %v1735
      %v1737 = vpop.f32.mrb[0].mxu0
      %1738 = vmatprep.mubr.f32.mxu0 0.0
      %1739 = vmatmul.mubr.f32.gmra.mrb[0].mxu0 %v1617
      %v1740 = vpop.f32.mrb[0].mxu0
      %v1741 = vadd.f32 %v1599, %v1740
      %v1742 = vpop.f32.mrb[0].mxu0
      %1743 = vmatprep.mubr.f32.mxu0 0.0
      %1744 = vmatmul.mubr.f32.gmra.mrb[0].mxu0 %v1620
      %v1745 = vpop.f32.mrb[0].mxu0
      %v1746 = vadd.f32 %v1599, %v1745
      %v1747 = vpop.f32.mrb[0].mxu0
      %1748 = vmatprep.mubr.f32.mxu0 0.0
      %1749 = vmatmul.mubr.f32.gmra.mrb[0].mxu0 %v1623
      %v1750 = vpop.f32.mrb[0].mxu0
      %v1751 = vadd.f32 %v1599, %v1750
      %v1752 = vpop.f32.mrb[0].mxu0
      %1753 = vmatprep.mubr.f32.mxu0 0.0
      %1754 = vmatmul.mubr.f32.gmra.mrb[0].mxu0 %v1626
      %v1755 = vpop.f32.mrb[0].mxu0
      %v1756 = vadd.f32 %v1599, %v1755
      %v1757 = vpop.f32.mrb[0].mxu0
      %1758 = vmatprep.mubr.f32.mxu0 0.0
      %1759 = vmatmul.mubr.f32.gmra.mrb[0].mxu0 %v1629
      %v1760 = vpop.f32.mrb[0].mxu0
      %v1761 = vadd.f32 %v1599, %v1760
      %v1762 = vpop.f32.mrb[0].mxu0
      %1763 = vmatprep.mubr.f32.mxu0 0.0
      %1764 = vmatmul.mubr.f32.gmra.mrb[0].mxu0 %v1632
      %v1765 = vpop.f32.mrb[0].mxu0
      %v1766 = vadd.f32 %v1599, %v1765
      %v1767 = vpop.f32.mrb[0].mxu0
      %1768 = vmatprep.mubr.f32.mxu0 0.0
      %1769 = vmatmul.mubr.f32.gmra.mrb[0].mxu0 %v1635
      %v1770 = vpop.f32.mrb[0].mxu0
      %v1771 = vadd.f32 %v1599, %v1770
      %v1772 = vpop.f32.mrb[0].mxu0
      %1773 = vmatprep.mubr.f32.mxu0 0.0
      %1774 = vmatmul.mubr.f32.gmra.mrb[0].mxu0 %v1638
      %v1775 = vpop.f32.mrb[0].mxu0
      %v1776 = vadd.f32 %v1599, %v1775
      %v1777 = vpop.f32.mrb[0].mxu0
      %1778 = vmatprep.mubr.f32.mxu0 0.0
      %1779 = vmatmul.mubr.f32.gmra.mrb[0].mxu0 %v1641
      %v1780 = vpop.f32.mrb[0].mxu0
      %v1781 = vadd.f32 %v1599, %v1780
      %v1782 = vpop.f32.mrb[0].mxu0
      %1783 = vmatprep.mubr.f32.mxu0 0.0
      %1784 = vmatmul.mubr.f32.gmra.mrb[0].mxu0 %v1644
      %v1785 = vpop.f32.mrb[0].mxu0
      %v1786 = vadd.f32 %v1599, %v1785
      %v1787 = vpop.f32.mrb[0].mxu0
      %1788 = vmatprep.mubr.f32.mxu0 0.0
      %1789 = vmatmul.mubr.f32.gmra.mrb[0].mxu0 %v1647
      %v1790 = vpop.f32.mrb[0].mxu0
      %v1791 = vadd.f32 %v1599, %v1790
      %v1792 = vpop.f32.mrb[0].mxu0
      %1793 = vdwg.mxu0
      %v1794 = vmax.f32 %v1716, 0.0
      %v1795 = vmax.f32 %v1721, 0.0
      %v1796 = vmax.f32 %v1726, 0.0
      %v1797 = vmax.f32 %v1731, 0.0
      %v1798 = vmax.f32 %v1736, 0.0
      %v1799 = vmax.f32 %v1741, 0.0
      %v1800 = vmax.f32 %v1746, 0.0
      %v1801 = vmax.f32 %v1751, 0.0
      %v1802 = vmax.f32 %v1756, 0.0
      %v1803 = vmax.f32 %v1761, 0.0
      %v1804 = vmax.f32 %v1766, 0.0
      %v1805 = vmax.f32 %v1771, 0.0
      %v1806 = vmax.f32 %v1776, 0.0
      %v1807 = vmax.f32 %v1781, 0.0
      %v1808 = vmax.f32 %v1786, 0.0
      %v1809 = vmax.f32 %v1791, 0.0
      %v1810 = vld [vmem:[%s12] sm:$0xff]
      %v1811 = vld [vmem:[%s12 + $0x8] sm:$0xff]
      %v1812 = vld [vmem:[%s12 + $0x10] sm:$0xff]
      %v1813 = vld [vmem:[%s12 + $0x18] sm:$0xff]
      %v1814 = vld [vmem:[%s12 + $0x20] sm:$0xff]
      %v1815 = vld [vmem:[%s12 + $0x28] sm:$0xff]
      %v1816 = vld [vmem:[%s12 + $0x30] sm:$0xff]
      %v1817 = vld [vmem:[%s12 + $0x38] sm:$0xff]
      %v1818 = vld [vmem:[%s13] sm:$0x1]
      %v1820 = vlaneseq
      %v1821 = vshrl.u32 %v1820, 7
      %v1822 = vsub.s32 0, %v1821
      %v1823 = vrot.slane %v1818, %v1822
      %v1826 = vsel %vm786, %v1794, 0
      %v1829 = vsel %vm786, %v1795, 0
      %v1832 = vsel %vm786, %v1796, 0
      %v1835 = vsel %vm786, %v1797, 0
      %v1838 = vsel %vm786, %v1798, 0
      %v1841 = vsel %vm786, %v1799, 0
      %v1844 = vsel %vm786, %v1800, 0
      %v1847 = vsel %vm786, %v1801, 0
      %v1850 = vsel %vm786, %v1802, 0
      %v1853 = vsel %vm786, %v1803, 0
      %v1856 = vsel %vm786, %v1804, 0
      %v1859 = vsel %vm786, %v1805, 0
      %v1862 = vsel %vm786, %v1806, 0
      %v1865 = vsel %vm786, %v1807, 0
      %v1868 = vsel %vm786, %v1808, 0
      %v1871 = vsel %vm786, %v1809, 0
      %1873 = vmatprep.subr.mxu0 0.0
      %1874 = vmatpush1.msra.mxu0 %v1810
      %1875 = vmatprep.subr.mxu0 0.0
      %1876 = vmatpush1.msra.mxu0 %v1811
      %1877 = vmatprep.subr.mxu0 0.0
      %1878 = vmatpush1.msra.mxu0 %v1812
      %1879 = vmatprep.subr.mxu0 0.0
      %1880 = vmatpush1.msra.mxu0 %v1813
      %1881 = vmatprep.subr.mxu0 0.0
      %1882 = vmatpush1.msra.mxu0 %v1814
      %1883 = vmatprep.subr.mxu0 0.0
      %1884 = vmatpush1.msra.mxu0 %v1815
      %1885 = vmatprep.subr.mxu0 0.0
      %1886 = vmatpush1.msra.mxu0 %v1816
      %1887 = vmatprep.subr.mxu0 0.0
      %1888 = vmatpush1.msra.mxu0 %v1817
      %1889 = vmatprep.subr.mxu0 0.0
      %1890 = vmatpush1.msra.mxu0 0.0
      %1891 = vmatprep.subr.mxu0 0.0
      %1892 = vmatpush1.msra.mxu0 0.0
      %1893 = vmatprep.subr.mxu0 0.0
      %1894 = vmatpush1.msra.mxu0 0.0
      %1895 = vmatprep.subr.mxu0 0.0
      %1896 = vmatpush1.msra.mxu0 0.0
      %1897 = vmatprep.subr.mxu0 0.0
      %1898 = vmatpush1.msra.mxu0 0.0
      %1899 = vmatprep.subr.mxu0 0.0
      %1900 = vmatpush1.msra.mxu0 0.0
      %1901 = vmatprep.subr.mxu0 0.0
      %1902 = vmatpush1.msra.mxu0 0.0
      %1903 = vmatprep.subr.mxu0 0.0
      %1904 = vmatpush1.msra.mxu0 0.0
      %1905 = vmatprep.subr.mxu0 0.0
      %1906 = vmatpush1.msra.mxu0 0.0
      %1907 = vmatprep.subr.mxu0 0.0
      %1908 = vmatpush1.msra.mxu0 0.0
      %1909 = vmatprep.subr.mxu0 0.0
      %1910 = vmatpush1.msra.mxu0 0.0
      %1911 = vmatprep.subr.mxu0 0.0
      %1912 = vmatpush1.msra.mxu0 0.0
      %1913 = vmatprep.subr.mxu0 0.0
      %1914 = vmatpush1.msra.mxu0 0.0
      %1915 = vmatprep.subr.mxu0 0.0
      %1916 = vmatpush1.msra.mxu0 0.0
      %1917 = vmatprep.subr.mxu0 0.0
      %1918 = vmatpush1.msra.mxu0 0.0
      %1919 = vmatprep.subr.mxu0 0.0
      %1920 = vmatpush1.msra.mxu0 0.0
      %1921 = vmatprep.subr.mxu0 0.0
      %1922 = vmatpush1.msra.mxu0 0.0
      %1923 = vmatprep.subr.mxu0 0.0
      %1924 = vmatpush1.msra.mxu0 0.0
      %1925 = vmatprep.subr.mxu0 0.0
      %1926 = vmatpush1.msra.mxu0 0.0
      %1927 = vmatprep.subr.mxu0 0.0
      %1928 = vmatpush1.msra.mxu0 0.0
      %1929 = vmatprep.subr.mxu0 0.0
      %1930 = vmatpush1.msra.mxu0 0.0
      %1931 = vmatprep.subr.mxu0 0.0
      %1932 = vmatpush1.msra.mxu0 0.0
      %1933 = vmatprep.subr.mxu0 0.0
      %1934 = vmatpush1.msra.mxu0 0.0
      %1935 = vmatprep.subr.mxu0 0.0
      %1936 = vmatpush1.msra.mxu0 0.0
      %1937 = vmatprep.mubr.f32.mxu0 0.0
      %1938 = vmatmul.mubr.f32.gmra.mrb[0].mxu0 %v1826
      %v1939 = vpop.f32.mrb[0].mxu0
      %v1940 = vadd.f32 %v1823, %v1939
      %v1941 = vpop.f32.mrb[0].mxu0
      %1942 = vmatprep.mubr.f32.mxu0 0.0
      %1943 = vmatmul.mubr.f32.gmra.mrb[0].mxu0 %v1829
      %v1944 = vpop.f32.mrb[0].mxu0
      %v1945 = vadd.f32 %v1823, %v1944
      %v1946 = vpop.f32.mrb[0].mxu0
      %1947 = vmatprep.mubr.f32.mxu0 0.0
      %1948 = vmatmul.mubr.f32.gmra.mrb[0].mxu0 %v1832
      %v1949 = vpop.f32.mrb[0].mxu0
      %v1950 = vadd.f32 %v1823, %v1949
      %v1951 = vpop.f32.mrb[0].mxu0
      %1952 = vmatprep.mubr.f32.mxu0 0.0
      %1953 = vmatmul.mubr.f32.gmra.mrb[0].mxu0 %v1835
      %v1954 = vpop.f32.mrb[0].mxu0
      %v1955 = vadd.f32 %v1823, %v1954
      %v1956 = vpop.f32.mrb[0].mxu0
      %1957 = vmatprep.mubr.f32.mxu0 0.0
      %1958 = vmatmul.mubr.f32.gmra.mrb[0].mxu0 %v1838
      %v1959 = vpop.f32.mrb[0].mxu0
      %v1960 = vadd.f32 %v1823, %v1959
      %v1961 = vpop.f32.mrb[0].mxu0
      %1962 = vmatprep.mubr.f32.mxu0 0.0
      %1963 = vmatmul.mubr.f32.gmra.mrb[0].mxu0 %v1841
      %v1964 = vpop.f32.mrb[0].mxu0
      %v1965 = vadd.f32 %v1823, %v1964
      %v1966 = vpop.f32.mrb[0].mxu0
      %1967 = vmatprep.mubr.f32.mxu0 0.0
      %1968 = vmatmul.mubr.f32.gmra.mrb[0].mxu0 %v1844
      %v1969 = vpop.f32.mrb[0].mxu0
      %v1970 = vadd.f32 %v1823, %v1969
      %v1971 = vpop.f32.mrb[0].mxu0
      %1972 = vmatprep.mubr.f32.mxu0 0.0
      %1973 = vmatmul.mubr.f32.gmra.mrb[0].mxu0 %v1847
      %v1974 = vpop.f32.mrb[0].mxu0
      %v1975 = vadd.f32 %v1823, %v1974
      %v1976 = vpop.f32.mrb[0].mxu0
      %1977 = vmatprep.mubr.f32.mxu0 0.0
      %1978 = vmatmul.mubr.f32.gmra.mrb[0].mxu0 %v1850
      %v1979 = vpop.f32.mrb[0].mxu0
      %v1980 = vadd.f32 %v1823, %v1979
      %v1981 = vpop.f32.mrb[0].mxu0
      %1982 = vmatprep.mubr.f32.mxu0 0.0
      %1983 = vmatmul.mubr.f32.gmra.mrb[0].mxu0 %v1853
      %v1984 = vpop.f32.mrb[0].mxu0
      %v1985 = vadd.f32 %v1823, %v1984
      %v1986 = vpop.f32.mrb[0].mxu0
      %1987 = vmatprep.mubr.f32.mxu0 0.0
      %1988 = vmatmul.mubr.f32.gmra.mrb[0].mxu0 %v1856
      %v1989 = vpop.f32.mrb[0].mxu0
      %v1990 = vadd.f32 %v1823, %v1989
      %v1991 = vpop.f32.mrb[0].mxu0
      %1992 = vmatprep.mubr.f32.mxu0 0.0
      %1993 = vmatmul.mubr.f32.gmra.mrb[0].mxu0 %v1859
      %v1994 = vpop.f32.mrb[0].mxu0
      %v1995 = vadd.f32 %v1823, %v1994
      %v1996 = vpop.f32.mrb[0].mxu0
      %1997 = vmatprep.mubr.f32.mxu0 0.0
      %1998 = vmatmul.mubr.f32.gmra.mrb[0].mxu0 %v1862
      %v1999 = vpop.f32.mrb[0].mxu0
      %v2000 = vadd.f32 %v1823, %v1999
      %v2001 = vpop.f32.mrb[0].mxu0
      %2002 = vmatprep.mubr.f32.mxu0 0.0
      %2003 = vmatmul.mubr.f32.gmra.mrb[0].mxu0 %v1865
      %v2004 = vpop.f32.mrb[0].mxu0
      %v2005 = vadd.f32 %v1823, %v2004
      %v2006 = vpop.f32.mrb[0].mxu0
      %2007 = vmatprep.mubr.f32.mxu0 0.0
      %2008 = vmatmul.mubr.f32.gmra.mrb[0].mxu0 %v1868
      %v2009 = vpop.f32.mrb[0].mxu0
      %v2010 = vadd.f32 %v1823, %v2009
      %v2011 = vpop.f32.mrb[0].mxu0
      %2012 = vmatprep.mubr.f32.mxu0 0.0
      %2013 = vmatmul.mubr.f32.gmra.mrb[0].mxu0 %v1871
      %v2014 = vpop.f32.mrb[0].mxu0
      %v2015 = vadd.f32 %v1823, %v2014
      %v2016 = vpop.f32.mrb[0].mxu0
      %2017 = vdwg.mxu0
      %2018 = vst.msk [vmem:[%s526] sm:$0xff] %vm561, %v1940
      %2019 = vst.msk [vmem:[%s526 + $0x8] sm:$0xff] %vm561, %v1945
      %2020 = vst.msk [vmem:[%s526 + $0x10] sm:$0xff] %vm561, %v1950
      %2021 = vst.msk [vmem:[%s526 + $0x18] sm:$0xff] %vm561, %v1955
      %2022 = vst.msk [vmem:[%s526 + $0x20] sm:$0xff] %vm561, %v1960
      %2023 = vst.msk [vmem:[%s526 + $0x28] sm:$0xff] %vm561, %v1965
      %2024 = vst.msk [vmem:[%s526 + $0x30] sm:$0xff] %vm561, %v1970
      %2025 = vst.msk [vmem:[%s526 + $0x38] sm:$0xff] %vm561, %v1975
      %2026 = vst.msk [vmem:[%s526 + $0x40] sm:$0xff] %vm561, %v1980
      %2027 = vst.msk [vmem:[%s526 + $0x48] sm:$0xff] %vm561, %v1985
      %2028 = vst.msk [vmem:[%s526 + $0x50] sm:$0xff] %vm561, %v1990
      %2029 = vst.msk [vmem:[%s526 + $0x58] sm:$0xff] %vm561, %v1995
      %2030 = vst.msk [vmem:[%s526 + $0x60] sm:$0xff] %vm561, %v2000
      %2031 = vst.msk [vmem:[%s526 + $0x68] sm:$0xff] %vm561, %v2005
      %2032 = vst.msk [vmem:[%s526 + $0x70] sm:$0xff] %vm561, %v2010
      %2033 = vst.msk [vmem:[%s526 + $0x78] sm:$0xff] %vm561, %v2015
      %2034 = vrot.lane.b32.xlu0 %v1348, 4
      %v2035 = vpop.permute.xlu0 %2034
      %2036 = vrot.lane.b32.xlu0 %v1349, 4
      %v2037 = vpop.permute.xlu0 %2036
      %2038 = vrot.lane.b32.xlu0 %v1350, 4
      %v2039 = vpop.permute.xlu0 %2038
      %2040 = vrot.lane.b32.xlu0 %v1351, 4
      %v2041 = vpop.permute.xlu0 %2040
      %2042 = vrot.lane.b32.xlu0 %v1352, 4
      %v2043 = vpop.permute.xlu0 %2042
      %2044 = vrot.lane.b32.xlu0 %v1353, 4
      %v2045 = vpop.permute.xlu0 %2044
      %2046 = vrot.lane.b32.xlu0 %v1354, 4
      %v2047 = vpop.permute.xlu0 %2046
      %2048 = vrot.lane.b32.xlu0 %v1355, 4
      %v2049 = vpop.permute.xlu0 %2048
      %2050 = vrot.lane.b32.xlu0 %v1356, 4
      %v2051 = vpop.permute.xlu0 %2050
      %2052 = vrot.lane.b32.xlu0 %v1357, 4
      %v2053 = vpop.permute.xlu0 %2052
      %2054 = vrot.lane.b32.xlu0 %v1358, 4
      %v2055 = vpop.permute.xlu0 %2054
      %2056 = vrot.lane.b32.xlu0 %v1359, 4
      %v2057 = vpop.permute.xlu0 %2056
      %2058 = vrot.lane.b32.xlu0 %v1360, 4
      %v2059 = vpop.permute.xlu0 %2058
      %2060 = vrot.lane.b32.xlu0 %v1361, 4
      %v2061 = vpop.permute.xlu0 %2060
      %2062 = vrot.lane.b32.xlu0 %v1362, 4
      %v2063 = vpop.permute.xlu0 %2062
      %2064 = vrot.lane.b32.xlu0 %v1363, 4
      %v2065 = vpop.permute.xlu0 %2064
      %vm2082 = vcmask 31744
      %v2083 = vsel %vm2082, %v1126, %v2035
      %v2084 = vsel %vm2082, %v1131, %v2037
      %v2085 = vsel %vm2082, %v1136, %v2039
      %v2086 = vsel %vm2082, %v1141, %v2041
      %v2087 = vsel %vm2082, %v1146, %v2043
      %v2088 = vsel %vm2082, %v1151, %v2045
      %v2089 = vsel %vm2082, %v1156, %v2047
      %v2090 = vsel %vm2082, %v1161, %v2049
      %v2091 = vsel %vm2082, %v1166, %v2051
      %v2092 = vsel %vm2082, %v1171, %v2053
      %v2093 = vsel %vm2082, %v1176, %v2055
      %v2094 = vsel %vm2082, %v1181, %v2057
      %v2095 = vsel %vm2082, %v1186, %v2059
      %v2096 = vsel %vm2082, %v1191, %v2061
      %v2097 = vsel %vm2082, %v1196, %v2063
      %v2098 = vsel %vm2082, %v1201, %v2065
      %vm2099 = vcmask 48128
      %2100 = vst.msk [vmem:[%s532] sm:$0xff] %vm2099, %v2083
      %2101 = vst.msk [vmem:[%s532 + $0x8] sm:$0xff] %vm2099, %v2084
      %2102 = vst.msk [vmem:[%s532 + $0x10] sm:$0xff] %vm2099, %v2085
      %2103 = vst.msk [vmem:[%s532 + $0x18] sm:$0xff] %vm2099, %v2086
      %2104 = vst.msk [vmem:[%s532 + $0x20] sm:$0xff] %vm2099, %v2087
      %2105 = vst.msk [vmem:[%s532 + $0x28] sm:$0xff] %vm2099, %v2088
      %2106 = vst.msk [vmem:[%s532 + $0x30] sm:$0xff] %vm2099, %v2089
      %2107 = vst.msk [vmem:[%s532 + $0x38] sm:$0xff] %vm2099, %v2090
      %2108 = vst.msk [vmem:[%s532 + $0x40] sm:$0xff] %vm2099, %v2091
      %2109 = vst.msk [vmem:[%s532 + $0x48] sm:$0xff] %vm2099, %v2092
      %2110 = vst.msk [vmem:[%s532 + $0x50] sm:$0xff] %vm2099, %v2093
      %2111 = vst.msk [vmem:[%s532 + $0x58] sm:$0xff] %vm2099, %v2094
      %2112 = vst.msk [vmem:[%s532 + $0x60] sm:$0xff] %vm2099, %v2095
      %2113 = vst.msk [vmem:[%s532 + $0x68] sm:$0xff] %vm2099, %v2096
      %2114 = vst.msk [vmem:[%s532 + $0x70] sm:$0xff] %vm2099, %v2097
      %2115 = vst.msk [vmem:[%s532 + $0x78] sm:$0xff] %vm2099, %v2098
      %s2116 = smul.u32 16, %s27
      %p2117 = scmp.lt.s32.totalorder %s2116, 31
      %s2118 = scalar_select %p2117, %s2116, 31
      %s2119 = smul.addr %s2118, 8
      %s2120 = scalar_lea.vmem %s14, %s2119
      %s2121 = smul.u32 16, %s27
      %p2122 = scmp.lt.s32.totalorder %s2121, 31
      %s2123 = scalar_select %p2122, %s2121, 31
      %s2124 = smul.addr %s2123, 8
      %s2125 = scalar_lea.vmem %s15, %s2124
      // Predicated region
      $region77: #{tpu_custom_call.1} parent=75 // pred_check
        %p2126 = pneg %p349
      $region78: #{tpu_custom_call.1} parent=75 // pred_check_branch
        %2128 = sbr.rel (%p2126) target = $region80
      $region79: #{tpu_custom_call.1} parent=75 // pred_region
        %s2129 = smul.u32 16, %s27
      $region80: #{tpu_custom_call.1} parent=75 // pred_fallthru
        _
      // Predicated region
      $region81: #{tpu_custom_call.1} parent=75 // pred_check
        %p2130 = pneg %p375
      $region82: #{tpu_custom_call.1} parent=75 // pred_check_branch
        %2132 = sbr.rel (%p2130) target = $region84
      $region83: #{tpu_custom_call.1} parent=75 // pred_region
        %s2133 = smul.u32 16, %s27
      $region84: #{tpu_custom_call.1} parent=75 // pred_fallthru
        _
    $region76: #{tpu_custom_call.1} parent=5 // pred_fallthru
      _
    %p2134 = scmp.le.s32.totalorder 2, %s22
    // Predicated region
    $region85: #{tpu_custom_call.1} parent=5 // pred_check
      %p2135 = pneg %p2134
    $region86: #{tpu_custom_call.1} parent=5 // pred_check_branch
      %2137 = sbr.rel (%p2135) target = $region88
    $region87: #{tpu_custom_call.1} parent=5 // pred_region
      %s2138 = ssub.s32 %s22, 2
      // Predicated region
      $region89: #{tpu_custom_call.1} parent=87 // pred_check
        %p2139 = pneg %p355
      $region90: #{tpu_custom_call.1} parent=87 // pred_check_branch
        %2141 = sbr.rel (%p2139) target = $region92
      $region91: #{tpu_custom_call.1} parent=87 // pred_region
        %s2142 = smul.u32 16, %s28
        %p2143 = scmp.lt.s32.totalorder %s2142, 31
        %s2144 = scalar_select %p2143, %s2142, 31
        %s2145 = smul.addr %s2144, 8
        %s2146 = scalar_lea.vmem %s14, %s2145
      $region92: #{tpu_custom_call.1} parent=87 // pred_fallthru
        _
      // Predicated region
      $region93: #{tpu_custom_call.1} parent=87 // pred_check
        %p2147 = pneg %p381
      $region94: #{tpu_custom_call.1} parent=87 // pred_check_branch
        %2149 = sbr.rel (%p2147) target = $region96
      $region95: #{tpu_custom_call.1} parent=87 // pred_region
        %s2150 = smul.u32 16, %s28
        %p2151 = scmp.lt.s32.totalorder %s2150, 31
        %s2152 = scalar_select %p2151, %s2150, 31
        %s2153 = smul.addr %s2152, 8
        %s2154 = scalar_lea.vmem %s15, %s2153
      $region96: #{tpu_custom_call.1} parent=87 // pred_fallthru
        _
    $region88: #{tpu_custom_call.1} parent=5 // pred_fallthru
      _
  $region6: #{tpu_custom_call.1} parent=0 // loop_footer
    %s26 = sadd.s32 1, %s22
  $region7: #{tpu_custom_call.1} parent=0 // loop_footer_branch
    %21 = sbr.rel target = $region3
  $region8: #{tpu_custom_call.1} parent=0 // loop_exit
    _

</llo_original>
